<compile_context>
chip_gen: v5e
topology: v5e:2x2
jax: 0.10.0
libtpu: 0.0.40
codegen_flags: <defaults>
</compile_context>

<pallas_src>
import functools

import jax
import jax.numpy as jnp
from jax.experimental import pallas as pl
from jax.experimental.pallas import tpu as pltpu


def _conv3x3_bias_relu_kernel(x_ref, w_ref, b_ref, o_ref, *, H, W):
    """One batch image, one Cout tile: 3x3 'SAME' conv + bias + ReLU.

    x_ref: (H+2, W+2, Cin)  bf16  halo-padded NHWC image
    w_ref: (9, Cin, Ct)     bf16  per-tap weight matrices, tap order (kh, kw)
    b_ref: (1, Ct)          f32   bias slice
    o_ref: (Ct, H*W)        f32   channels-major flat output (row-major NCHW)
    """
    x = x_ref[...]                      # whole padded image resident in VMEM
    cin = x.shape[-1]
    ct = o_ref.shape[0]

    acc = jnp.zeros((H * W, ct), jnp.float32)
    # Nine shifted taps sliced in VMEM (no HBM duplication), each one MXU
    # matmul with f32 accumulation.
    for kh in range(3):
        for kw in range(3):
            tap = x[kh:kh + H, kw:kw + W, :].reshape(H * W, cin)
            acc += jnp.dot(tap, w_ref[kh * 3 + kw],
                           preferred_element_type=jnp.float32)

    acc = jnp.maximum(acc + b_ref[...], 0.0)          # fused bias + ReLU (f32)
    o_ref[...] = acc.T.astype(o_ref.dtype)            # (Ct, H*W) == NCHW rows


def conv_block_forward(x_nchw, weight_oihw, bias):
    """ReLU(Conv2d(x, 3x3, padding=1)) — same semantics as the PyTorch ConvBlock.

    x_nchw:      (N, Cin, H, W)     float32
    weight_oihw: (Cout, Cin, 3, 3)  float32 (PyTorch layout)
    bias:        (Cout,)            float32
    returns:     (N, Cout, H, W)    float32
    """
    N, Cin, H, W = x_nchw.shape
    Cout = weight_oihw.shape[0]

    # Layout plumbing (one cheap pass): cast to bf16 *first*, then NCHW->NHWC
    # and halo pad.  No im2col, no K/Cout zero padding written to HBM.
    x_nhwc = jnp.transpose(x_nchw.astype(jnp.bfloat16), (0, 2, 3, 1))
    x_pad = jnp.pad(x_nhwc, ((0, 0), (1, 1), (1, 1), (0, 0)))   # (N, H+2, W+2, Cin)

    # Per-tap weight matrices (9, Cin, Cout), tap order (kh, kw); tiny.
    w_taps = jnp.transpose(weight_oihw, (2, 3, 1, 0)).reshape(9, Cin, Cout)
    w_taps = w_taps.astype(jnp.bfloat16)
    b_row = bias.reshape(1, Cout).astype(jnp.float32)

    # Cout tiling bounds the resident weight block / f32 accumulator (matters
    # on v7x's 64 MiB VMEM for large Cout); no channel padding is materialized.
    co_tile = 256 if (Cout % 256 == 0) else Cout
    n_co = Cout // co_tile

    # Explicit VMEM budget: double-buffered x/out blocks + weights + accumulator.
    x_blk = (H + 2) * (W + 2) * Cin * 2
    o_blk = co_tile * H * W * 4
    w_blk = 9 * Cin * co_tile * 2 + co_tile * 4
    acc_bytes = H * W * co_tile * 4
    vmem_limit = int(max(2 * (x_blk + o_blk) + w_blk + acc_bytes + (8 << 20),
                         32 << 20))

    kernel = functools.partial(_conv3x3_bias_relu_kernel, H=H, W=W)

    out_flat = pl.pallas_call(
        kernel,
        out_shape=jax.ShapeDtypeStruct((N, Cout, H * W), jnp.float32),
        grid_spec=pltpu.PrefetchScalarGridSpec(
            num_scalar_prefetch=0,
            grid=(N, n_co),                    # both parallel: feeds both v7x TCs
            in_specs=[
                pl.BlockSpec((None, H + 2, W + 2, Cin), lambda n, j: (n, 0, 0, 0)),
                pl.BlockSpec((9, Cin, co_tile), lambda n, j: (0, 0, j)),
                pl.BlockSpec((1, co_tile), lambda n, j: (0, j)),
            ],
            out_specs=pl.BlockSpec((None, co_tile, H * W), lambda n, j: (n, j, 0)),
        ),
        compiler_params=pltpu.CompilerParams(
            dimension_semantics=("parallel", "parallel"),
            vmem_limit_bytes=vmem_limit,
        ),
    )(x_pad, w_taps, b_row)

    # (N, Cout, H*W) is already row-major NCHW — the reshape is free (no extra
    # transpose pass over the output in HBM).
    return out_flat.reshape(N, Cout, H, W).astype(x_nchw.dtype)


if __name__ == "__main__":
    key = jax.random.PRNGKey(0)
    k_x, k_w, k_b = jax.random.split(key, 3)

    N, Cin, Cout, H, W = 2, 4, 8, 16, 16

    x = jax.random.normal(k_x, (N, Cin, H, W), dtype=jnp.float32)
    # Same shapes / init range as nn.Conv2d(Cin, Cout, 3, padding=1).
    fan_in = Cin * 3 * 3
    bound = 1.0 / (fan_in ** 0.5)
    weight = jax.random.uniform(k_w, (Cout, Cin, 3, 3),
                                minval=-bound, maxval=bound, dtype=jnp.float32)
    bias = jax.random.uniform(k_b, (Cout,),
                              minval=-bound, maxval=bound, dtype=jnp.float32)

    out = conv_block_forward(x, weight, bias)
    jax.block_until_ready(out)

    # Reference: f32 Conv2d(pad=1) + bias + ReLU.  Kernel uses bf16 MXU inputs
    # with f32 accumulation, so tolerances are bf16-level.
    ref = jax.lax.conv_general_dilated(
        x, weight, window_strides=(1, 1), padding="SAME",
        dimension_numbers=("NCHW", "OIHW", "NCHW"))
    ref = jnp.maximum(ref + bias.reshape(1, Cout, 1, 1), 0.0)

    assert out.shape == (N, Cout, H, W)
    assert jnp.allclose(out, ref, atol=3e-2, rtol=3e-2)

    print("KERNEL_OK")
</pallas_src>

<mosaic_0001>
module attributes {stable_mosaic.version = 11 : i64} {
  func.func @_conv3x3_bias_relu_kernel(%arg0: i32, %arg1: i32, %arg2: memref<1x18x18x4xbf16, #tpu.memory_space<vmem>>, %arg3: memref<9x4x8xbf16, #tpu.memory_space<vmem>>, %arg4: memref<1x8xf32, #tpu.memory_space<vmem>>, %arg5: memref<1x8x256xf32, #tpu.memory_space<vmem>>) attributes {dimension_semantics = [#tpu.dimension_semantics<parallel>, #tpu.dimension_semantics<parallel>], iteration_bounds = array<i64: 2, 1>, scalar_prefetch = 0 : i64, scratch_operands = 0 : i64, tpu.core_type = #tpu.core_type<tc>, window_params = [{transform_indices = @transform_0, window_bounds = array<i64: 1, 18, 18, 4>}, {transform_indices = @transform_1, window_bounds = array<i64: 9, 4, 8>}, {transform_indices = @transform_2, window_bounds = array<i64: 1, 8>}, {transform_indices = @transform_3, window_bounds = array<i64: 1, 8, 256>}]} {
    %c0 = arith.constant 0 : index
    %c0_0 = arith.constant 0 : index
    %c0_1 = arith.constant 0 : index
    %c0_2 = arith.constant 0 : index
    %0 = vector.load %arg2[%c0, %c0_0, %c0_1, %c0_2] : memref<1x18x18x4xbf16, #tpu.memory_space<vmem>>, vector<1x18x18x4xbf16>
    %1 = vector.shape_cast %0 : vector<1x18x18x4xbf16> to vector<18x18x4xbf16>
    %cst = arith.constant 0.000000e+00 : f32
    %2 = vector.broadcast %cst : f32 to vector<256x8xf32>
    %3 = vector.extract_strided_slice %1 {offsets = [0, 0, 0], sizes = [16, 16, 4], strides = [1, 1, 1]} : vector<18x18x4xbf16> to vector<16x16x4xbf16>
    %4 = vector.shape_cast %3 : vector<16x16x4xbf16> to vector<256x4xbf16>
    %c0_3 = arith.constant 0 : index
    %c0_4 = arith.constant 0 : index
    %c0_5 = arith.constant 0 : index
    %5 = vector.load %arg3[%c0_3, %c0_4, %c0_5] : memref<9x4x8xbf16, #tpu.memory_space<vmem>>, vector<1x4x8xbf16>
    %6 = vector.shape_cast %5 : vector<1x4x8xbf16> to vector<4x8xbf16>
    %cst_6 = arith.constant dense<0.000000e+00> : vector<256x8xf32>
    %7 = tpu.matmul %4, %6, %cst_6 {dimension_numbers = #tpu.dot_dimension_numbers<[1], [0], [0], [1], [0, 0, 1, 1], [], []>} : vector<256x4xbf16>, vector<4x8xbf16>, vector<256x8xf32> -> vector<256x8xf32>
    %8 = arith.addf %2, %7 : vector<256x8xf32>
    %9 = vector.extract_strided_slice %1 {offsets = [0, 1, 0], sizes = [16, 16, 4], strides = [1, 1, 1]} : vector<18x18x4xbf16> to vector<16x16x4xbf16>
    %10 = vector.shape_cast %9 : vector<16x16x4xbf16> to vector<256x4xbf16>
    %c1 = arith.constant 1 : index
    %c0_7 = arith.constant 0 : index
    %c0_8 = arith.constant 0 : index
    %11 = vector.load %arg3[%c1, %c0_7, %c0_8] : memref<9x4x8xbf16, #tpu.memory_space<vmem>>, vector<1x4x8xbf16>
    %12 = vector.shape_cast %11 : vector<1x4x8xbf16> to vector<4x8xbf16>
    %cst_9 = arith.constant dense<0.000000e+00> : vector<256x8xf32>
    %13 = tpu.matmul %10, %12, %cst_9 {dimension_numbers = #tpu.dot_dimension_numbers<[1], [0], [0], [1], [0, 0, 1, 1], [], []>} : vector<256x4xbf16>, vector<4x8xbf16>, vector<256x8xf32> -> vector<256x8xf32>
    %14 = arith.addf %8, %13 : vector<256x8xf32>
    %15 = vector.extract_strided_slice %1 {offsets = [0, 2, 0], sizes = [16, 16, 4], strides = [1, 1, 1]} : vector<18x18x4xbf16> to vector<16x16x4xbf16>
    %16 = vector.shape_cast %15 : vector<16x16x4xbf16> to vector<256x4xbf16>
    %c2 = arith.constant 2 : index
    %c0_10 = arith.constant 0 : index
    %c0_11 = arith.constant 0 : index
    %17 = vector.load %arg3[%c2, %c0_10, %c0_11] : memref<9x4x8xbf16, #tpu.memory_space<vmem>>, vector<1x4x8xbf16>
    %18 = vector.shape_cast %17 : vector<1x4x8xbf16> to vector<4x8xbf16>
    %cst_12 = arith.constant dense<0.000000e+00> : vector<256x8xf32>
    %19 = tpu.matmul %16, %18, %cst_12 {dimension_numbers = #tpu.dot_dimension_numbers<[1], [0], [0], [1], [0, 0, 1, 1], [], []>} : vector<256x4xbf16>, vector<4x8xbf16>, vector<256x8xf32> -> vector<256x8xf32>
    %20 = arith.addf %14, %19 : vector<256x8xf32>
    %21 = vector.extract_strided_slice %1 {offsets = [1, 0, 0], sizes = [16, 16, 4], strides = [1, 1, 1]} : vector<18x18x4xbf16> to vector<16x16x4xbf16>
    %22 = vector.shape_cast %21 : vector<16x16x4xbf16> to vector<256x4xbf16>
    %c3 = arith.constant 3 : index
    %c0_13 = arith.constant 0 : index
    %c0_14 = arith.constant 0 : index
    %23 = vector.load %arg3[%c3, %c0_13, %c0_14] : memref<9x4x8xbf16, #tpu.memory_space<vmem>>, vector<1x4x8xbf16>
    %24 = vector.shape_cast %23 : vector<1x4x8xbf16> to vector<4x8xbf16>
    %cst_15 = arith.constant dense<0.000000e+00> : vector<256x8xf32>
    %25 = tpu.matmul %22, %24, %cst_15 {dimension_numbers = #tpu.dot_dimension_numbers<[1], [0], [0], [1], [0, 0, 1, 1], [], []>} : vector<256x4xbf16>, vector<4x8xbf16>, vector<256x8xf32> -> vector<256x8xf32>
    %26 = arith.addf %20, %25 : vector<256x8xf32>
    %27 = vector.extract_strided_slice %1 {offsets = [1, 1, 0], sizes = [16, 16, 4], strides = [1, 1, 1]} : vector<18x18x4xbf16> to vector<16x16x4xbf16>
    %28 = vector.shape_cast %27 : vector<16x16x4xbf16> to vector<256x4xbf16>
    %c4 = arith.constant 4 : index
    %c0_16 = arith.constant 0 : index
    %c0_17 = arith.constant 0 : index
    %29 = vector.load %arg3[%c4, %c0_16, %c0_17] : memref<9x4x8xbf16, #tpu.memory_space<vmem>>, vector<1x4x8xbf16>
    %30 = vector.shape_cast %29 : vector<1x4x8xbf16> to vector<4x8xbf16>
    %cst_18 = arith.constant dense<0.000000e+00> : vector<256x8xf32>
    %31 = tpu.matmul %28, %30, %cst_18 {dimension_numbers = #tpu.dot_dimension_numbers<[1], [0], [0], [1], [0, 0, 1, 1], [], []>} : vector<256x4xbf16>, vector<4x8xbf16>, vector<256x8xf32> -> vector<256x8xf32>
    %32 = arith.addf %26, %31 : vector<256x8xf32>
    %33 = vector.extract_strided_slice %1 {offsets = [1, 2, 0], sizes = [16, 16, 4], strides = [1, 1, 1]} : vector<18x18x4xbf16> to vector<16x16x4xbf16>
    %34 = vector.shape_cast %33 : vector<16x16x4xbf16> to vector<256x4xbf16>
    %c5 = arith.constant 5 : index
    %c0_19 = arith.constant 0 : index
    %c0_20 = arith.constant 0 : index
    %35 = vector.load %arg3[%c5, %c0_19, %c0_20] : memref<9x4x8xbf16, #tpu.memory_space<vmem>>, vector<1x4x8xbf16>
    %36 = vector.shape_cast %35 : vector<1x4x8xbf16> to vector<4x8xbf16>
    %cst_21 = arith.constant dense<0.000000e+00> : vector<256x8xf32>
    %37 = tpu.matmul %34, %36, %cst_21 {dimension_numbers = #tpu.dot_dimension_numbers<[1], [0], [0], [1], [0, 0, 1, 1], [], []>} : vector<256x4xbf16>, vector<4x8xbf16>, vector<256x8xf32> -> vector<256x8xf32>
    %38 = arith.addf %32, %37 : vector<256x8xf32>
    %39 = vector.extract_strided_slice %1 {offsets = [2, 0, 0], sizes = [16, 16, 4], strides = [1, 1, 1]} : vector<18x18x4xbf16> to vector<16x16x4xbf16>
    %40 = vector.shape_cast %39 : vector<16x16x4xbf16> to vector<256x4xbf16>
    %c6 = arith.constant 6 : index
    %c0_22 = arith.constant 0 : index
    %c0_23 = arith.constant 0 : index
    %41 = vector.load %arg3[%c6, %c0_22, %c0_23] : memref<9x4x8xbf16, #tpu.memory_space<vmem>>, vector<1x4x8xbf16>
    %42 = vector.shape_cast %41 : vector<1x4x8xbf16> to vector<4x8xbf16>
    %cst_24 = arith.constant dense<0.000000e+00> : vector<256x8xf32>
    %43 = tpu.matmul %40, %42, %cst_24 {dimension_numbers = #tpu.dot_dimension_numbers<[1], [0], [0], [1], [0, 0, 1, 1], [], []>} : vector<256x4xbf16>, vector<4x8xbf16>, vector<256x8xf32> -> vector<256x8xf32>
    %44 = arith.addf %38, %43 : vector<256x8xf32>
    %45 = vector.extract_strided_slice %1 {offsets = [2, 1, 0], sizes = [16, 16, 4], strides = [1, 1, 1]} : vector<18x18x4xbf16> to vector<16x16x4xbf16>
    %46 = vector.shape_cast %45 : vector<16x16x4xbf16> to vector<256x4xbf16>
    %c7 = arith.constant 7 : index
    %c0_25 = arith.constant 0 : index
    %c0_26 = arith.constant 0 : index
    %47 = vector.load %arg3[%c7, %c0_25, %c0_26] : memref<9x4x8xbf16, #tpu.memory_space<vmem>>, vector<1x4x8xbf16>
    %48 = vector.shape_cast %47 : vector<1x4x8xbf16> to vector<4x8xbf16>
    %cst_27 = arith.constant dense<0.000000e+00> : vector<256x8xf32>
    %49 = tpu.matmul %46, %48, %cst_27 {dimension_numbers = #tpu.dot_dimension_numbers<[1], [0], [0], [1], [0, 0, 1, 1], [], []>} : vector<256x4xbf16>, vector<4x8xbf16>, vector<256x8xf32> -> vector<256x8xf32>
    %50 = arith.addf %44, %49 : vector<256x8xf32>
    %51 = vector.extract_strided_slice %1 {offsets = [2, 2, 0], sizes = [16, 16, 4], strides = [1, 1, 1]} : vector<18x18x4xbf16> to vector<16x16x4xbf16>
    %52 = vector.shape_cast %51 : vector<16x16x4xbf16> to vector<256x4xbf16>
    %c8 = arith.constant 8 : index
    %c0_28 = arith.constant 0 : index
    %c0_29 = arith.constant 0 : index
    %53 = vector.load %arg3[%c8, %c0_28, %c0_29] : memref<9x4x8xbf16, #tpu.memory_space<vmem>>, vector<1x4x8xbf16>
    %54 = vector.shape_cast %53 : vector<1x4x8xbf16> to vector<4x8xbf16>
    %cst_30 = arith.constant dense<0.000000e+00> : vector<256x8xf32>
    %55 = tpu.matmul %52, %54, %cst_30 {dimension_numbers = #tpu.dot_dimension_numbers<[1], [0], [0], [1], [0, 0, 1, 1], [], []>} : vector<256x4xbf16>, vector<4x8xbf16>, vector<256x8xf32> -> vector<256x8xf32>
    %56 = arith.addf %50, %55 : vector<256x8xf32>
    %c0_31 = arith.constant 0 : index
    %c0_32 = arith.constant 0 : index
    %57 = vector.load %arg4[%c0_31, %c0_32] : memref<1x8xf32, #tpu.memory_space<vmem>>, vector<1x8xf32>
    %58 = vector.broadcast %57 : vector<1x8xf32> to vector<256x8xf32>
    %59 = arith.addf %56, %58 : vector<256x8xf32>
    %cst_33 = arith.constant 0.000000e+00 : f32
    %60 = vector.broadcast %cst_33 : f32 to vector<256x8xf32>
    %61 = arith.maximumf %59, %60 : vector<256x8xf32>
    %62 = tpu.transpose %61, [1, 0] : vector<256x8xf32> -> vector<8x256xf32>
    %c0_34 = arith.constant 0 : index
    %c0_35 = arith.constant 0 : index
    %c0_36 = arith.constant 0 : index
    %63 = vector.load %arg5[%c0_34, %c0_35, %c0_36] : memref<1x8x256xf32, #tpu.memory_space<vmem>>, vector<1x8x256xf32>
    %64 = vector.shape_cast %63 : vector<1x8x256xf32> to vector<8x256xf32>
    %65 = vector.shape_cast %62 : vector<8x256xf32> to vector<1x8x256xf32>
    tpu.vector_store %arg5[%c0_34, %c0_35, %c0_36], %65 {strides = array<i32>} : memref<1x8x256xf32, #tpu.memory_space<vmem>>, vector<1x8x256xf32>,
    return
  }
  func.func @transform_0(%arg0: i32, %arg1: i32) -> (i32, i32, i32, i32) {
    %c0_i32 = arith.constant 0 : i32
    %c0_i32_0 = arith.constant 0 : i32
    %c0_i32_1 = arith.constant 0 : i32
    %c0_i32_2 = arith.constant 0 : i32
    return %arg0, %c0_i32, %c0_i32_0, %c0_i32_1 : i32, i32, i32, i32
  }
  func.func @transform_1(%arg0: i32, %arg1: i32) -> (i32, i32, i32) {
    %c0_i32 = arith.constant 0 : i32
    %c0_i32_0 = arith.constant 0 : i32
    %c0_i32_1 = arith.constant 0 : i32
    return %c0_i32, %c0_i32_0, %arg1 : i32, i32, i32
  }
  func.func @transform_2(%arg0: i32, %arg1: i32) -> (i32, i32) {
    %c0_i32 = arith.constant 0 : i32
    %c0_i32_0 = arith.constant 0 : i32
    return %c0_i32, %arg1 : i32, i32
  }
  func.func @transform_3(%arg0: i32, %arg1: i32) -> (i32, i32, i32) {
    %c0_i32 = arith.constant 0 : i32
    %c0_i32_0 = arith.constant 0 : i32
    return %arg0, %arg1, %c0_i32 : i32, i32, i32
  }
}

</mosaic_0001>

<llo_original>
// kernel: tpu_custom_call.1
$region0: #{tpu_custom_call.1}
  #allocation0 [shape = 'u32[]', space=smem, size = 0x4, offset = 0x4, fixed_abs, tag = 'smem constant byte address 0x4 - core index']
  #allocation1 [shape = 'u32[72,128]{1,0:T(1,128)}', space=vmem, size = 0x9000, scoped, tag = 'internal scratch']
  %s0 = inlined_call_operand.vmem [shape: bf16[2,18,18,4], index: 0, kind: input, shape index: {}]
  %s1 = inlined_call_operand.vmem [shape: bf16[9,4,8], index: 1, kind: input, shape index: {}]
  %s2 = inlined_call_operand.vmem [shape: f32[1,8], index: 2, kind: input, shape index: {}]
  %s3 = inlined_call_operand.hbm [shape: f32[2,8,256], index: 3, kind: output, shape index: {}]
  %s4 = sld [smem:[#allocation0]]
  $region45: #{tpu_custom_call.1} parent=0
    _
  %s6 = ssub.s32 1, %s4
  %s7 = scalar_select 0, %s6, %s4
  $region1: #{tpu_custom_call.1} parent=0
    #allocation2 [shape = 'u8[16384]{0}', space=vmem, size = 0x4000, scoped, tag = 'output window, operand 0']
    #allocation3 [shape = 's32[2]{0}', space=sflag, size = 0x8, scoped, tag = 'scoped memory for tpu_custom_call.1']
    %8 = vsyncpa [#allocation3], 0
    %s9 = scalar_lea.sflag [#allocation3], 1
    %10 = vsyncpa %s9, 0
    loop: start=0, step=1, limit=4
    $region2: #{tpu_custom_call.1} parent=1 // loop_pre_header
      _
    $region3: #{tpu_custom_call.1} parent=1 // loop_header
      %s12 = sphi 0, %s16
      %p13 = scmp.ge.s32.totalorder %s12, 4
      %s19 = sphi 0, %s31
      %s20 = sphi 0, %s27
      %s21 = sphi 0, %s19
      %s22 = sphi 0, %s20
      %s23 = sphi 0, %s21
      %s24 = sphi 0, %s22
      %s34 = sphi 0, %s36
      %s37 = sphi 0, %s34
      %s38 = sphi 0, %s37
      %s54 = sphi 0, %s38
      %s60 = sphi 0, %s62
      %s63 = sphi 0, %s60
      %s64 = sphi 0, %s63
      %s80 = sphi 0, %s64
      %s86 = sphi 0, %s88
      %s89 = sphi 0, %s86
      %s90 = sphi 0, %s89
      %s106 = sphi 0, %s90
      %s114 = sphi 0, %s116
      %s117 = sphi 0, %s114
      %s118 = sphi 0, %s117
      %s134 = sphi 0, %s118
    $region4: #{tpu_custom_call.1} parent=1 // loop_header_branch
      %15 = sbr.rel (%p13) target = $region8
    $region5: #{tpu_custom_call.1} parent=1 // loop_body
      %s17 = ssub.s32 %s12, 1
      %s18 = ssub.s32 %s12, 2
      %s25 = sadd.s32 1, %s20
      %p26 = scmp.ge.s32.totalorder %s25, 1
      %s27 = scalar_select %p26, 0, %s25
      %s28 = sadd.s32 1, %s19
      %s29 = scalar_select %p26, %s28, %s19
      %p30 = scmp.ge.s32.totalorder %s29, 2
      %s31 = scalar_select %p30, 0, %s29
      %s32 = ssub.s32 %s19, %s31
      %p33 = scmp.eq.s32.totalorder %s32, 0
      %s35 = sadd.s32 %s34, 1
      %s36 = scalar_select %p33, %s34, %s35
      %p39 = pneg %p33
      %p40 = scmp.eq.s32.totalorder %s12, 1
      %p41 = por %p39, %p40
      %p42 = scmp.ne.s32.totalorder %s34, %s37
      %p43 = scmp.eq.s32.totalorder %s12, 0
      %p44 = por %p42, %p43
      %p45 = scmp.ne.s32.totalorder %s34, %s37
      %p46 = scmp.eq.s32.totalorder %s17, 1
      %p47 = por %p45, %p46
      %p48 = scmp.ne.s32.totalorder %s37, %s38
      %p49 = scmp.eq.s32.totalorder %s17, 0
      %p50 = por %p48, %p49
      %p51 = scmp.ne.s32.totalorder %s37, %s38
      %p52 = scmp.eq.s32.totalorder %s18, 1
      %p53 = por %p51, %p52
      %p55 = scmp.ne.s32.totalorder %s38, %s54
      %p56 = scmp.eq.s32.totalorder %s18, 0
      %p57 = por %p55, %p56
      %s58 = ssub.s32 %s20, %s27
      %p59 = scmp.eq.s32.totalorder %s58, 0
      %s61 = sadd.s32 %s60, 1
      %s62 = scalar_select %p59, %s60, %s61
      %p65 = pneg %p59
      %p66 = scmp.eq.s32.totalorder %s12, 1
      %p67 = por %p65, %p66
      %p68 = scmp.ne.s32.totalorder %s60, %s63
      %p69 = scmp.eq.s32.totalorder %s12, 0
      %p70 = por %p68, %p69
      %p71 = scmp.ne.s32.totalorder %s60, %s63
      %p72 = scmp.eq.s32.totalorder %s17, 1
      %p73 = por %p71, %p72
      %p74 = scmp.ne.s32.totalorder %s63, %s64
      %p75 = scmp.eq.s32.totalorder %s17, 0
      %p76 = por %p74, %p75
      %p77 = scmp.ne.s32.totalorder %s63, %s64
      %p78 = scmp.eq.s32.totalorder %s18, 1
      %p79 = por %p77, %p78
      %p81 = scmp.ne.s32.totalorder %s64, %s80
      %p82 = scmp.eq.s32.totalorder %s18, 0
      %p83 = por %p81, %p82
      %s84 = ssub.s32 %s20, %s27
      %p85 = scmp.eq.s32.totalorder %s84, 0
      %s87 = sadd.s32 %s86, 1
      %s88 = scalar_select %p85, %s86, %s87
      %p91 = pneg %p85
      %p92 = scmp.eq.s32.totalorder %s12, 1
      %p93 = por %p91, %p92
      %p94 = scmp.ne.s32.totalorder %s86, %s89
      %p95 = scmp.eq.s32.totalorder %s12, 0
      %p96 = por %p94, %p95
      %p97 = scmp.ne.s32.totalorder %s86, %s89
      %p98 = scmp.eq.s32.totalorder %s17, 1
      %p99 = por %p97, %p98
      %p100 = scmp.ne.s32.totalorder %s89, %s90
      %p101 = scmp.eq.s32.totalorder %s17, 0
      %p102 = por %p100, %p101
      %p103 = scmp.ne.s32.totalorder %s89, %s90
      %p104 = scmp.eq.s32.totalorder %s18, 1
      %p105 = por %p103, %p104
      %p107 = scmp.ne.s32.totalorder %s90, %s106
      %p108 = scmp.eq.s32.totalorder %s18, 0
      %p109 = por %p107, %p108
      %s110 = ssub.s32 %s19, %s31
      %s111 = ssub.s32 %s20, %s27
      %s112 = sor.u32 %s110, %s111
      %p113 = scmp.eq.s32.totalorder %s112, 0
      %s115 = sadd.s32 %s114, 1
      %s116 = scalar_select %p113, %s114, %s115
      %p119 = pneg %p113
      %p120 = scmp.eq.s32.totalorder %s12, 1
      %p121 = por %p119, %p120
      %p122 = scmp.ne.s32.totalorder %s114, %s117
      %p123 = scmp.eq.s32.totalorder %s12, 0
      %p124 = por %p122, %p123
      %p125 = scmp.ne.s32.totalorder %s114, %s117
      %p126 = scmp.eq.s32.totalorder %s17, 1
      %p127 = por %p125, %p126
      %p128 = scmp.ne.s32.totalorder %s117, %s118
      %p129 = scmp.eq.s32.totalorder %s17, 0
      %p130 = por %p128, %p129
      %p131 = scmp.ne.s32.totalorder %s117, %s118
      %p132 = scmp.eq.s32.totalorder %s18, 1
      %p133 = por %p131, %p132
      %p135 = scmp.ne.s32.totalorder %s118, %s134
      %p136 = scmp.eq.s32.totalorder %s18, 0
      %p137 = por %p135, %p136
      %p138 = scmp.le.s32.totalorder 1, %s12
      %p139 = scmp.lt.s32.totalorder %s12, 3
      %p140 = pnand %p138, %p139
      %p141 = pneg %p140
      // Predicated region
      $region9: #{tpu_custom_call.1} parent=5 // pred_check
        _
      $region10: #{tpu_custom_call.1} parent=5 // pred_check_branch
        %143 = sbr.rel (%p140) target = $region12
      $region11: #{tpu_custom_call.1} parent=5 // pred_region
        %s144 = ssub.s32 %s12, 1
        // Predicated region
        $region13: #{tpu_custom_call.1} parent=11 // pred_check
          %p145 = pneg %p76
        $region14: #{tpu_custom_call.1} parent=11 // pred_check_branch
          %147 = sbr.rel (%p145) target = $region16
        $region15: #{tpu_custom_call.1} parent=11 // pred_region
          %p148 = scmp.lt.s32.totalorder %s22, 0
          %s149 = scalar_select %p148, %s22, 0
          %s150 = smul.addr %s149, 2
          %s151 = scalar_lea.vmem %s1, %s150
        $region16: #{tpu_custom_call.1} parent=11 // pred_fallthru
          _
        // Predicated region
        $region17: #{tpu_custom_call.1} parent=11 // pred_check
          %p152 = pneg %p102
        $region18: #{tpu_custom_call.1} parent=11 // pred_check_branch
          %154 = sbr.rel (%p152) target = $region20
        $region19: #{tpu_custom_call.1} parent=11 // pred_region
          %p155 = scmp.lt.s32.totalorder %s22, 0
          %s156 = scalar_select %p155, %s22, 0
          %s157 = scalar_lea.vmem %s2, %s156
        $region20: #{tpu_custom_call.1} parent=11 // pred_fallthru
          _
      $region12: #{tpu_custom_call.1} parent=5 // pred_fallthru
        _
      %p158 = scmp.lt.s32.totalorder %s12, 2
      // Predicated region
      $region21: #{tpu_custom_call.1} parent=5 // pred_check
        %p159 = pneg %p158
      $region22: #{tpu_custom_call.1} parent=5 // pred_check_branch
        %161 = sbr.rel (%p159) target = $region24
      $region23: #{tpu_custom_call.1} parent=5 // pred_region
        // Predicated region
        $region25: #{tpu_custom_call.1} parent=23 // pred_check
          %p162 = pneg %p44
        $region26: #{tpu_custom_call.1} parent=23 // pred_check_branch
          %164 = sbr.rel (%p162) target = $region28
        $region27: #{tpu_custom_call.1} parent=23 // pred_region
          %p165 = scmp.lt.s32.totalorder %s19, 1
          %s166 = scalar_select %p165, %s19, 1
          %s167 = smul.addr %s166, 54
          %s168 = smul.addr %s167, 4
          %s169 = scalar_lea.vmem %s0, %s168
        $region28: #{tpu_custom_call.1} parent=23 // pred_fallthru
          _
      $region24: #{tpu_custom_call.1} parent=5 // pred_fallthru
        _
      %p170 = scmp.le.s32.totalorder 1, %s12
      %p171 = scmp.lt.s32.totalorder %s12, 3
      %p172 = pnand %p170, %p171
      %p173 = pneg %p172
      // Predicated region
      $region29: #{tpu_custom_call.1} parent=5 // pred_check
        _
      $region30: #{tpu_custom_call.1} parent=5 // pred_check_branch
        %175 = sbr.rel (%p172) target = $region32
      $region31: #{tpu_custom_call.1} parent=5 // pred_region
        %s176 = ssub.s32 %s12, 1
        %p177 = scmp.lt.s32.totalorder %s21, 1
        %s178 = scalar_select %p177, %s21, 1
        %s179 = smul.addr %s178, 54
        %s180 = smul.addr %s179, 4
        %s181 = scalar_lea.vmem %s0, %s180
        %p182 = pneg %p50
        %p183 = pneg %p47
        %p184 = scmp.lt.s32.totalorder %s22, 0
        %s185 = scalar_select %p184, %s22, 0
        %s186 = smul.addr %s185, 2
        %s187 = scalar_lea.vmem %s1, %s186
        %p188 = pneg %p76
        %p189 = pneg %p73
        %p190 = scmp.lt.s32.totalorder %s22, 0
        %s191 = scalar_select %p190, %s22, 0
        %s192 = scalar_lea.vmem %s2, %s191
        %p193 = pneg %p102
        %p194 = pneg %p99
        %p195 = pneg %p130
        %p196 = pneg %p127
        %s197 = sand.u32 %s117, 1
        %s198 = scalar_lea.sflag [#allocation3], %s197
        %s199 = sand.u32 %s117, 1
        %s200 = smul.addr %s199, 16
        %s201 = scalar_lea.vmem [#allocation2], %s200
        %p202 = scmp.lt.s32.totalorder %s21, 1
        %s203 = scalar_select %p202, %s21, 1
        %s204 = smul.addr %s203, 54
        %s205 = smul.addr %s204, 4
        %s206 = scalar_lea.vmem %s0, %s205
        %p207 = scmp.lt.s32.totalorder %s22, 0
        %s208 = scalar_select %p207, %s22, 0
        %s209 = smul.addr %s208, 2
        %s210 = scalar_lea.vmem %s1, %s209
        %p211 = scmp.lt.s32.totalorder %s22, 0
        %s212 = scalar_select %p211, %s22, 0
        %s213 = scalar_lea.vmem %s2, %s212
        %v215 = vld [vmem:[%s206] sm:$0xf]
        %v216 = vld [vmem:[%s206 + $0x4] sm:$0xf]
        %v217 = vld [vmem:[%s206 + $0x8] sm:$0x1]
        %v218 = vld [vmem:[%s206 + $0xc] sm:$0xf]
        %v219 = vld [vmem:[%s206 + $0x10] sm:$0xf]
        %v220 = vld [vmem:[%s206 + $0x14] sm:$0x1]
        %v221 = vld [vmem:[%s206 + $0x18] sm:$0xf]
        %v222 = vld [vmem:[%s206 + $0x1c] sm:$0xf]
        %v223 = vld [vmem:[%s206 + $0x20] sm:$0x1]
        %v224 = vld [vmem:[%s206 + $0x24] sm:$0xf]
        %v225 = vld [vmem:[%s206 + $0x28] sm:$0xf]
        %v226 = vld [vmem:[%s206 + $0x2c] sm:$0x1]
        %v227 = vld [vmem:[%s206 + $0x30] sm:$0xf]
        %v228 = vld [vmem:[%s206 + $0x34] sm:$0xf]
        %v229 = vld [vmem:[%s206 + $0x38] sm:$0x1]
        %v230 = vld [vmem:[%s206 + $0x3c] sm:$0xf]
        %v231 = vld [vmem:[%s206 + $0x40] sm:$0xf]
        %v232 = vld [vmem:[%s206 + $0x44] sm:$0x1]
        %v233 = vld [vmem:[%s206 + $0x48] sm:$0xf]
        %v234 = vld [vmem:[%s206 + $0x4c] sm:$0xf]
        %v235 = vld [vmem:[%s206 + $0x50] sm:$0x1]
        %v236 = vld [vmem:[%s206 + $0x54] sm:$0xf]
        %v237 = vld [vmem:[%s206 + $0x58] sm:$0xf]
        %v238 = vld [vmem:[%s206 + $0x5c] sm:$0x1]
        %v239 = vld [vmem:[%s206 + $0x60] sm:$0xf]
        %v240 = vld [vmem:[%s206 + $0x64] sm:$0xf]
        %v241 = vld [vmem:[%s206 + $0x68] sm:$0x1]
        %v242 = vld [vmem:[%s206 + $0x6c] sm:$0xf]
        %v243 = vld [vmem:[%s206 + $0x70] sm:$0xf]
        %v244 = vld [vmem:[%s206 + $0x74] sm:$0x1]
        %v245 = vld [vmem:[%s206 + $0x78] sm:$0xf]
        %v246 = vld [vmem:[%s206 + $0x7c] sm:$0xf]
        %v247 = vld [vmem:[%s206 + $0x80] sm:$0x1]
        %v248 = vld [vmem:[%s206 + $0x84] sm:$0xf]
        %v249 = vld [vmem:[%s206 + $0x88] sm:$0xf]
        %v250 = vld [vmem:[%s206 + $0x8c] sm:$0x1]
        %v251 = vld [vmem:[%s206 + $0x90] sm:$0xf]
        %v252 = vld [vmem:[%s206 + $0x94] sm:$0xf]
        %v253 = vld [vmem:[%s206 + $0x98] sm:$0x1]
        %v254 = vld [vmem:[%s206 + $0x9c] sm:$0xf]
        %v255 = vld [vmem:[%s206 + $0xa0] sm:$0xf]
        %v256 = vld [vmem:[%s206 + $0xa4] sm:$0x1]
        %v257 = vld [vmem:[%s206 + $0xa8] sm:$0xf]
        %v258 = vld [vmem:[%s206 + $0xac] sm:$0xf]
        %v259 = vld [vmem:[%s206 + $0xb0] sm:$0x1]
        %v260 = vld [vmem:[%s206 + $0xb4] sm:$0xf]
        %v261 = vld [vmem:[%s206 + $0xb8] sm:$0xf]
        %v262 = vld [vmem:[%s206 + $0xbc] sm:$0x1]
        %v263 = vld [vmem:[%s206 + $0xc0] sm:$0xf]
        %v264 = vld [vmem:[%s206 + $0xc4] sm:$0xf]
        %v265 = vld [vmem:[%s206 + $0xc8] sm:$0x1]
        %v266 = vld [vmem:[%s206 + $0xcc] sm:$0xf]
        %v267 = vld [vmem:[%s206 + $0xd0] sm:$0xf]
        %v268 = vld [vmem:[%s206 + $0xd4] sm:$0x1]
        %v269 = vld [vmem:[%s210] sm:$0x3]
        %vm270 = vsmask.f32 3328
        %vm271 = vsmask.f32 7440
        %vm272 = vmor %vm270, %vm271
        %v274 = vshrl.u32 %v215, 16
        %v276 = vrot.slane %v274, 4
        %v277 = vshll.u32 %v215, 16
        %v279 = vrot.slane %v277, 5
        %v280 = vor.u32 %v276, %v279
        %v281 = vrot.slane %v280, 4
        %v283 = vshll.u32 %v216, 16
        %v285 = vrot.slane %v283, 5
        %v286 = vsel %vm272, %v281, %v285
        %v287 = vshrl.u32 %v216, 16
        %v289 = vrot.slane %v287, 4
        %v290 = vor.u32 %v289, %v285
        %v291 = vrot.slane %v290, 4
        %v293 = vshll.u32 %v217, 16
        %v295 = vrot.slane %v293, 5
        %v296 = vsel %vm272, %v291, %v295
        %v298 = vshrl.u32 %v218, 16
        %v300 = vrot.slane %v298, 4
        %v301 = vshll.u32 %v218, 16
        %v303 = vrot.slane %v301, 5
        %v304 = vor.u32 %v300, %v303
        %v305 = vrot.slane %v304, 4
        %v307 = vshll.u32 %v219, 16
        %v309 = vrot.slane %v307, 5
        %v310 = vsel %vm272, %v305, %v309
        %v311 = vshrl.u32 %v219, 16
        %v313 = vrot.slane %v311, 4
        %v314 = vor.u32 %v313, %v309
        %v315 = vrot.slane %v314, 4
        %v317 = vshll.u32 %v220, 16
        %v319 = vrot.slane %v317, 5
        %v320 = vsel %vm272, %v315, %v319
        %v322 = vshrl.u32 %v221, 16
        %v324 = vrot.slane %v322, 4
        %v325 = vshll.u32 %v221, 16
        %v327 = vrot.slane %v325, 5
        %v328 = vor.u32 %v324, %v327
        %v329 = vrot.slane %v328, 4
        %v331 = vshll.u32 %v222, 16
        %v333 = vrot.slane %v331, 5
        %v334 = vsel %vm272, %v329, %v333
        %v335 = vshrl.u32 %v222, 16
        %v337 = vrot.slane %v335, 4
        %v338 = vor.u32 %v337, %v333
        %v339 = vrot.slane %v338, 4
        %v341 = vshll.u32 %v223, 16
        %v343 = vrot.slane %v341, 5
        %v344 = vsel %vm272, %v339, %v343
        %v346 = vshrl.u32 %v224, 16
        %v348 = vrot.slane %v346, 4
        %v349 = vshll.u32 %v224, 16
        %v351 = vrot.slane %v349, 5
        %v352 = vor.u32 %v348, %v351
        %v353 = vrot.slane %v352, 4
        %v355 = vshll.u32 %v225, 16
        %v357 = vrot.slane %v355, 5
        %v358 = vsel %vm272, %v353, %v357
        %v359 = vshrl.u32 %v225, 16
        %v361 = vrot.slane %v359, 4
        %v362 = vor.u32 %v361, %v357
        %v363 = vrot.slane %v362, 4
        %v365 = vshll.u32 %v226, 16
        %v367 = vrot.slane %v365, 5
        %v368 = vsel %vm272, %v363, %v367
        %v370 = vshrl.u32 %v227, 16
        %v372 = vrot.slane %v370, 4
        %v373 = vshll.u32 %v227, 16
        %v375 = vrot.slane %v373, 5
        %v376 = vor.u32 %v372, %v375
        %v377 = vrot.slane %v376, 4
        %v379 = vshll.u32 %v228, 16
        %v381 = vrot.slane %v379, 5
        %v382 = vsel %vm272, %v377, %v381
        %v383 = vshrl.u32 %v228, 16
        %v385 = vrot.slane %v383, 4
        %v386 = vor.u32 %v385, %v381
        %v387 = vrot.slane %v386, 4
        %v389 = vshll.u32 %v229, 16
        %v391 = vrot.slane %v389, 5
        %v392 = vsel %vm272, %v387, %v391
        %v394 = vshrl.u32 %v230, 16
        %v396 = vrot.slane %v394, 4
        %v397 = vshll.u32 %v230, 16
        %v399 = vrot.slane %v397, 5
        %v400 = vor.u32 %v396, %v399
        %v401 = vrot.slane %v400, 4
        %v403 = vshll.u32 %v231, 16
        %v405 = vrot.slane %v403, 5
        %v406 = vsel %vm272, %v401, %v405
        %v407 = vshrl.u32 %v231, 16
        %v409 = vrot.slane %v407, 4
        %v410 = vor.u32 %v409, %v405
        %v411 = vrot.slane %v410, 4
        %v413 = vshll.u32 %v232, 16
        %v415 = vrot.slane %v413, 5
        %v416 = vsel %vm272, %v411, %v415
        %v418 = vshrl.u32 %v233, 16
        %v420 = vrot.slane %v418, 4
        %v421 = vshll.u32 %v233, 16
        %v423 = vrot.slane %v421, 5
        %v424 = vor.u32 %v420, %v423
        %v425 = vrot.slane %v424, 4
        %v427 = vshll.u32 %v234, 16
        %v429 = vrot.slane %v427, 5
        %v430 = vsel %vm272, %v425, %v429
        %v431 = vshrl.u32 %v234, 16
        %v433 = vrot.slane %v431, 4
        %v434 = vor.u32 %v433, %v429
        %v435 = vrot.slane %v434, 4
        %v437 = vshll.u32 %v235, 16
        %v439 = vrot.slane %v437, 5
        %v440 = vsel %vm272, %v435, %v439
        %v442 = vshrl.u32 %v236, 16
        %v444 = vrot.slane %v442, 4
        %v445 = vshll.u32 %v236, 16
        %v447 = vrot.slane %v445, 5
        %v448 = vor.u32 %v444, %v447
        %v449 = vrot.slane %v448, 4
        %v451 = vshll.u32 %v237, 16
        %v453 = vrot.slane %v451, 5
        %v454 = vsel %vm272, %v449, %v453
        %v455 = vshrl.u32 %v237, 16
        %v457 = vrot.slane %v455, 4
        %v458 = vor.u32 %v457, %v453
        %v459 = vrot.slane %v458, 4
        %v461 = vshll.u32 %v238, 16
        %v463 = vrot.slane %v461, 5
        %v464 = vsel %vm272, %v459, %v463
        %v466 = vshrl.u32 %v239, 16
        %v468 = vrot.slane %v466, 4
        %v469 = vshll.u32 %v239, 16
        %v471 = vrot.slane %v469, 5
        %v472 = vor.u32 %v468, %v471
        %v473 = vrot.slane %v472, 4
        %v475 = vshll.u32 %v240, 16
        %v477 = vrot.slane %v475, 5
        %v478 = vsel %vm272, %v473, %v477
        %v479 = vshrl.u32 %v240, 16
        %v481 = vrot.slane %v479, 4
        %v482 = vor.u32 %v481, %v477
        %v483 = vrot.slane %v482, 4
        %v485 = vshll.u32 %v241, 16
        %v487 = vrot.slane %v485, 5
        %v488 = vsel %vm272, %v483, %v487
        %v490 = vshrl.u32 %v242, 16
        %v492 = vrot.slane %v490, 4
        %v493 = vshll.u32 %v242, 16
        %v495 = vrot.slane %v493, 5
        %v496 = vor.u32 %v492, %v495
        %v497 = vrot.slane %v496, 4
        %v499 = vshll.u32 %v243, 16
        %v501 = vrot.slane %v499, 5
        %v502 = vsel %vm272, %v497, %v501
        %v503 = vshrl.u32 %v243, 16
        %v505 = vrot.slane %v503, 4
        %v506 = vor.u32 %v505, %v501
        %v507 = vrot.slane %v506, 4
        %v509 = vshll.u32 %v244, 16
        %v511 = vrot.slane %v509, 5
        %v512 = vsel %vm272, %v507, %v511
        %v514 = vshrl.u32 %v245, 16
        %v516 = vrot.slane %v514, 4
        %v517 = vshll.u32 %v245, 16
        %v519 = vrot.slane %v517, 5
        %v520 = vor.u32 %v516, %v519
        %v521 = vrot.slane %v520, 4
        %v523 = vshll.u32 %v246, 16
        %v525 = vrot.slane %v523, 5
        %v526 = vsel %vm272, %v521, %v525
        %v527 = vshrl.u32 %v246, 16
        %v529 = vrot.slane %v527, 4
        %v530 = vor.u32 %v529, %v525
        %v531 = vrot.slane %v530, 4
        %v533 = vshll.u32 %v247, 16
        %v535 = vrot.slane %v533, 5
        %v536 = vsel %vm272, %v531, %v535
        %v538 = vshrl.u32 %v248, 16
        %v540 = vrot.slane %v538, 4
        %v541 = vshll.u32 %v248, 16
        %v543 = vrot.slane %v541, 5
        %v544 = vor.u32 %v540, %v543
        %v545 = vrot.slane %v544, 4
        %v547 = vshll.u32 %v249, 16
        %v549 = vrot.slane %v547, 5
        %v550 = vsel %vm272, %v545, %v549
        %v551 = vshrl.u32 %v249, 16
        %v553 = vrot.slane %v551, 4
        %v554 = vor.u32 %v553, %v549
        %v555 = vrot.slane %v554, 4
        %v557 = vshll.u32 %v250, 16
        %v559 = vrot.slane %v557, 5
        %v560 = vsel %vm272, %v555, %v559
        %v562 = vshrl.u32 %v251, 16
        %v564 = vrot.slane %v562, 4
        %v565 = vshll.u32 %v251, 16
        %v567 = vrot.slane %v565, 5
        %v568 = vor.u32 %v564, %v567
        %v569 = vrot.slane %v568, 4
        %v571 = vshll.u32 %v252, 16
        %v573 = vrot.slane %v571, 5
        %v574 = vsel %vm272, %v569, %v573
        %v575 = vshrl.u32 %v252, 16
        %v577 = vrot.slane %v575, 4
        %v578 = vor.u32 %v577, %v573
        %v579 = vrot.slane %v578, 4
        %v581 = vshll.u32 %v253, 16
        %v583 = vrot.slane %v581, 5
        %v584 = vsel %vm272, %v579, %v583
        %v586 = vshrl.u32 %v254, 16
        %v588 = vrot.slane %v586, 4
        %v589 = vshll.u32 %v254, 16
        %v591 = vrot.slane %v589, 5
        %v592 = vor.u32 %v588, %v591
        %v593 = vrot.slane %v592, 4
        %v595 = vshll.u32 %v255, 16
        %v597 = vrot.slane %v595, 5
        %v598 = vsel %vm272, %v593, %v597
        %v599 = vshrl.u32 %v255, 16
        %v601 = vrot.slane %v599, 4
        %v602 = vor.u32 %v601, %v597
        %v603 = vrot.slane %v602, 4
        %v605 = vshll.u32 %v256, 16
        %v607 = vrot.slane %v605, 5
        %v608 = vsel %vm272, %v603, %v607
        %v610 = vshrl.u32 %v257, 16
        %v612 = vrot.slane %v610, 4
        %v613 = vshll.u32 %v257, 16
        %v615 = vrot.slane %v613, 5
        %v616 = vor.u32 %v612, %v615
        %v617 = vrot.slane %v616, 4
        %v619 = vshll.u32 %v258, 16
        %v621 = vrot.slane %v619, 5
        %v622 = vsel %vm272, %v617, %v621
        %v623 = vshrl.u32 %v258, 16
        %v625 = vrot.slane %v623, 4
        %v626 = vor.u32 %v625, %v621
        %v627 = vrot.slane %v626, 4
        %v629 = vshll.u32 %v259, 16
        %v631 = vrot.slane %v629, 5
        %v632 = vsel %vm272, %v627, %v631
        %v634 = vshrl.u32 %v260, 16
        %v636 = vrot.slane %v634, 4
        %v637 = vshll.u32 %v260, 16
        %v639 = vrot.slane %v637, 5
        %v640 = vor.u32 %v636, %v639
        %v641 = vrot.slane %v640, 4
        %v643 = vshll.u32 %v261, 16
        %v645 = vrot.slane %v643, 5
        %v646 = vsel %vm272, %v641, %v645
        %v647 = vshrl.u32 %v261, 16
        %v649 = vrot.slane %v647, 4
        %v650 = vor.u32 %v649, %v645
        %v651 = vrot.slane %v650, 4
        %v653 = vshll.u32 %v262, 16
        %v655 = vrot.slane %v653, 5
        %v656 = vsel %vm272, %v651, %v655
        %s657 = scalar_lea.vmem %s210, 2
        %v658 = vld [vmem:[%s657] sm:$0x3]
        %v659 = vunpack.c.l.b16 %v286
        %v660 = vunpack.c.l.b16 %v296
        %v661 = vunpack.c.l.b16 %v310
        %v662 = vunpack.c.l.b16 %v320
        %v663 = vunpack.c.l.b16 %v334
        %v664 = vunpack.c.l.b16 %v344
        %v665 = vunpack.c.l.b16 %v358
        %v666 = vunpack.c.l.b16 %v368
        %v667 = vunpack.c.l.b16 %v382
        %v668 = vunpack.c.l.b16 %v392
        %v669 = vunpack.c.l.b16 %v406
        %v670 = vunpack.c.l.b16 %v416
        %v671 = vunpack.c.l.b16 %v430
        %v672 = vunpack.c.l.b16 %v440
        %v673 = vunpack.c.l.b16 %v454
        %v674 = vunpack.c.l.b16 %v464
        %v675 = vunpack.c.l.b16 %v478
        %v676 = vunpack.c.l.b16 %v488
        %v677 = vunpack.c.l.b16 %v502
        %v678 = vunpack.c.l.b16 %v512
        %v679 = vunpack.c.l.b16 %v526
        %v680 = vunpack.c.l.b16 %v536
        %v681 = vunpack.c.l.b16 %v550
        %v682 = vunpack.c.l.b16 %v560
        %v683 = vunpack.c.l.b16 %v574
        %v684 = vunpack.c.l.b16 %v584
        %v685 = vunpack.c.l.b16 %v598
        %v686 = vunpack.c.l.b16 %v608
        %v687 = vunpack.c.l.b16 %v622
        %v688 = vunpack.c.l.b16 %v632
        %v689 = vunpack.c.l.b16 %v646
        %v690 = vunpack.c.l.b16 %v656
        %v691 = vpack.c.b16 %v660, %v659
        %v692 = vpack.c.b16 %v662, %v661
        %v693 = vpack.c.b16 %v664, %v663
        %v694 = vpack.c.b16 %v666, %v665
        %v695 = vpack.c.b16 %v668, %v667
        %v696 = vpack.c.b16 %v670, %v669
        %v697 = vpack.c.b16 %v672, %v671
        %v698 = vpack.c.b16 %v674, %v673
        %v699 = vpack.c.b16 %v676, %v675
        %v700 = vpack.c.b16 %v678, %v677
        %v701 = vpack.c.b16 %v680, %v679
        %v702 = vpack.c.b16 %v682, %v681
        %v703 = vpack.c.b16 %v684, %v683
        %v704 = vpack.c.b16 %v686, %v685
        %v705 = vpack.c.b16 %v688, %v687
        %v706 = vpack.c.b16 %v690, %v689
        %vm707 = vcmask 31744
        %v709 = vsel %vm707, %v691, 0
        %v712 = vsel %vm707, %v692, 0
        %v715 = vsel %vm707, %v693, 0
        %v718 = vsel %vm707, %v694, 0
        %v721 = vsel %vm707, %v695, 0
        %v724 = vsel %vm707, %v696, 0
        %v727 = vsel %vm707, %v697, 0
        %v730 = vsel %vm707, %v698, 0
        %v733 = vsel %vm707, %v699, 0
        %v736 = vsel %vm707, %v700, 0
        %v739 = vsel %vm707, %v701, 0
        %v742 = vsel %vm707, %v702, 0
        %v745 = vsel %vm707, %v703, 0
        %v748 = vsel %vm707, %v704, 0
        %v751 = vsel %vm707, %v705, 0
        %v754 = vsel %vm707, %v706, 0
        %vm756 = vcmask 1041408
        %v758 = vsel %vm756, %v658, 0
        %760 = vmatpush.bf16.msra.mxu0 0
        %761 = vmatpush.bf16.msra.mxu0 0
        %762 = vmatpush.bf16.msra.mxu0 0
        %763 = vmatpush.bf16.msra.mxu0 0
        %764 = vmatpush.bf16.msra.mxu0 0
        %765 = vmatpush.bf16.msra.mxu0 0
        %766 = vmatpush.bf16.msra.mxu0 0
        %767 = vmatpush.bf16.msra.mxu0 %v758
        %768 = vmatmul.bf16.gmra.mxu0 %v709
        %v769 = vpop.f32.mrf.mxu0
        %v770 = vadd.f32 0.0, %v769
        %v771 = vpop.f32.mrf.mxu0
        %v772 = vadd.f32 0.0, %v771
        %773 = vmatmul.bf16.gmra.mxu0 %v712
        %v774 = vpop.f32.mrf.mxu0
        %v775 = vadd.f32 0.0, %v774
        %v776 = vpop.f32.mrf.mxu0
        %v777 = vadd.f32 0.0, %v776
        %778 = vmatmul.bf16.gmra.mxu0 %v715
        %v779 = vpop.f32.mrf.mxu0
        %v780 = vadd.f32 0.0, %v779
        %v781 = vpop.f32.mrf.mxu0
        %v782 = vadd.f32 0.0, %v781
        %783 = vmatmul.bf16.gmra.mxu0 %v718
        %v784 = vpop.f32.mrf.mxu0
        %v785 = vadd.f32 0.0, %v784
        %v786 = vpop.f32.mrf.mxu0
        %v787 = vadd.f32 0.0, %v786
        %788 = vmatmul.bf16.gmra.mxu0 %v721
        %v789 = vpop.f32.mrf.mxu0
        %v790 = vadd.f32 0.0, %v789
        %v791 = vpop.f32.mrf.mxu0
        %v792 = vadd.f32 0.0, %v791
        %793 = vmatmul.bf16.gmra.mxu0 %v724
        %v794 = vpop.f32.mrf.mxu0
        %v795 = vadd.f32 0.0, %v794
        %v796 = vpop.f32.mrf.mxu0
        %v797 = vadd.f32 0.0, %v796
        %798 = vmatmul.bf16.gmra.mxu0 %v727
        %v799 = vpop.f32.mrf.mxu0
        %v800 = vadd.f32 0.0, %v799
        %v801 = vpop.f32.mrf.mxu0
        %v802 = vadd.f32 0.0, %v801
        %803 = vmatmul.bf16.gmra.mxu0 %v730
        %v804 = vpop.f32.mrf.mxu0
        %v805 = vadd.f32 0.0, %v804
        %v806 = vpop.f32.mrf.mxu0
        %v807 = vadd.f32 0.0, %v806
        %808 = vmatmul.bf16.gmra.mxu0 %v733
        %v809 = vpop.f32.mrf.mxu0
        %v810 = vadd.f32 0.0, %v809
        %v811 = vpop.f32.mrf.mxu0
        %v812 = vadd.f32 0.0, %v811
        %813 = vmatmul.bf16.gmra.mxu0 %v736
        %v814 = vpop.f32.mrf.mxu0
        %v815 = vadd.f32 0.0, %v814
        %v816 = vpop.f32.mrf.mxu0
        %v817 = vadd.f32 0.0, %v816
        %818 = vmatmul.bf16.gmra.mxu0 %v739
        %v819 = vpop.f32.mrf.mxu0
        %v820 = vadd.f32 0.0, %v819
        %v821 = vpop.f32.mrf.mxu0
        %v822 = vadd.f32 0.0, %v821
        %823 = vmatmul.bf16.gmra.mxu0 %v742
        %v824 = vpop.f32.mrf.mxu0
        %v825 = vadd.f32 0.0, %v824
        %v826 = vpop.f32.mrf.mxu0
        %v827 = vadd.f32 0.0, %v826
        %828 = vmatmul.bf16.gmra.mxu0 %v745
        %v829 = vpop.f32.mrf.mxu0
        %v830 = vadd.f32 0.0, %v829
        %v831 = vpop.f32.mrf.mxu0
        %v832 = vadd.f32 0.0, %v831
        %833 = vmatmul.bf16.gmra.mxu0 %v748
        %v834 = vpop.f32.mrf.mxu0
        %v835 = vadd.f32 0.0, %v834
        %v836 = vpop.f32.mrf.mxu0
        %v837 = vadd.f32 0.0, %v836
        %838 = vmatmul.bf16.gmra.mxu0 %v751
        %v839 = vpop.f32.mrf.mxu0
        %v840 = vadd.f32 0.0, %v839
        %v841 = vpop.f32.mrf.mxu0
        %v842 = vadd.f32 0.0, %v841
        %843 = vmatmul.bf16.gmra.mxu0 %v754
        %v844 = vpop.f32.mrf.mxu0
        %v845 = vadd.f32 0.0, %v844
        %v846 = vpop.f32.mrf.mxu0
        %v847 = vadd.f32 0.0, %v846
        %848 = vdwg.mxu0
        %v881 = vunpack.c.l.b16 %v215
        %v882 = vunpack.c.l.b16 %v216
        %v883 = vunpack.c.l.b16 %v218
        %v884 = vunpack.c.l.b16 %v219
        %v885 = vunpack.c.l.b16 %v221
        %v886 = vunpack.c.l.b16 %v222
        %v887 = vunpack.c.l.b16 %v224
        %v888 = vunpack.c.l.b16 %v225
        %v889 = vunpack.c.l.b16 %v227
        %v890 = vunpack.c.l.b16 %v228
        %v891 = vunpack.c.l.b16 %v230
        %v892 = vunpack.c.l.b16 %v231
        %v893 = vunpack.c.l.b16 %v233
        %v894 = vunpack.c.l.b16 %v234
        %v895 = vunpack.c.l.b16 %v236
        %v896 = vunpack.c.l.b16 %v237
        %v897 = vunpack.c.l.b16 %v239
        %v898 = vunpack.c.l.b16 %v240
        %v899 = vunpack.c.l.b16 %v242
        %v900 = vunpack.c.l.b16 %v243
        %v901 = vunpack.c.l.b16 %v245
        %v902 = vunpack.c.l.b16 %v246
        %v903 = vunpack.c.l.b16 %v248
        %v904 = vunpack.c.l.b16 %v249
        %v905 = vunpack.c.l.b16 %v251
        %v906 = vunpack.c.l.b16 %v252
        %v907 = vunpack.c.l.b16 %v254
        %v908 = vunpack.c.l.b16 %v255
        %v909 = vunpack.c.l.b16 %v257
        %v910 = vunpack.c.l.b16 %v258
        %v911 = vunpack.c.l.b16 %v260
        %v912 = vunpack.c.l.b16 %v261
        %v913 = vpack.c.b16 %v882, %v881
        %v914 = vpack.c.b16 %v884, %v883
        %v915 = vpack.c.b16 %v886, %v885
        %v916 = vpack.c.b16 %v888, %v887
        %v917 = vpack.c.b16 %v890, %v889
        %v918 = vpack.c.b16 %v892, %v891
        %v919 = vpack.c.b16 %v894, %v893
        %v920 = vpack.c.b16 %v896, %v895
        %v921 = vpack.c.b16 %v898, %v897
        %v922 = vpack.c.b16 %v900, %v899
        %v923 = vpack.c.b16 %v902, %v901
        %v924 = vpack.c.b16 %v904, %v903
        %v925 = vpack.c.b16 %v906, %v905
        %v926 = vpack.c.b16 %v908, %v907
        %v927 = vpack.c.b16 %v910, %v909
        %v928 = vpack.c.b16 %v912, %v911
        %v930 = vsel %vm707, %v913, 0
        %v933 = vsel %vm707, %v914, 0
        %v936 = vsel %vm707, %v915, 0
        %v939 = vsel %vm707, %v916, 0
        %v942 = vsel %vm707, %v917, 0
        %v945 = vsel %vm707, %v918, 0
        %v948 = vsel %vm707, %v919, 0
        %v951 = vsel %vm707, %v920, 0
        %v954 = vsel %vm707, %v921, 0
        %v957 = vsel %vm707, %v922, 0
        %v960 = vsel %vm707, %v923, 0
        %v963 = vsel %vm707, %v924, 0
        %v966 = vsel %vm707, %v925, 0
        %v969 = vsel %vm707, %v926, 0
        %v972 = vsel %vm707, %v927, 0
        %v975 = vsel %vm707, %v928, 0
        %v978 = vsel %vm756, %v269, 0
        %980 = vmatpush.bf16.msra.mxu0 0
        %981 = vmatpush.bf16.msra.mxu0 0
        %982 = vmatpush.bf16.msra.mxu0 0
        %983 = vmatpush.bf16.msra.mxu0 0
        %984 = vmatpush.bf16.msra.mxu0 0
        %985 = vmatpush.bf16.msra.mxu0 0
        %986 = vmatpush.bf16.msra.mxu0 0
        %987 = vmatpush.bf16.msra.mxu0 %v978
        %988 = vmatmul.bf16.gmra.mxu0 %v930
        %v989 = vpop.f32.mrf.mxu0
        %v990 = vadd.f32 %v770, %v989
        %v991 = vpop.f32.mrf.mxu0
        %v992 = vadd.f32 %v772, %v991
        %993 = vmatmul.bf16.gmra.mxu0 %v933
        %v994 = vpop.f32.mrf.mxu0
        %v995 = vadd.f32 %v775, %v994
        %v996 = vpop.f32.mrf.mxu0
        %v997 = vadd.f32 %v777, %v996
        %998 = vmatmul.bf16.gmra.mxu0 %v936
        %v999 = vpop.f32.mrf.mxu0
        %v1000 = vadd.f32 %v780, %v999
        %v1001 = vpop.f32.mrf.mxu0
        %v1002 = vadd.f32 %v782, %v1001
        %1003 = vmatmul.bf16.gmra.mxu0 %v939
        %v1004 = vpop.f32.mrf.mxu0
        %v1005 = vadd.f32 %v785, %v1004
        %v1006 = vpop.f32.mrf.mxu0
        %v1007 = vadd.f32 %v787, %v1006
        %1008 = vmatmul.bf16.gmra.mxu0 %v942
        %v1009 = vpop.f32.mrf.mxu0
        %v1010 = vadd.f32 %v790, %v1009
        %v1011 = vpop.f32.mrf.mxu0
        %v1012 = vadd.f32 %v792, %v1011
        %1013 = vmatmul.bf16.gmra.mxu0 %v945
        %v1014 = vpop.f32.mrf.mxu0
        %v1015 = vadd.f32 %v795, %v1014
        %v1016 = vpop.f32.mrf.mxu0
        %v1017 = vadd.f32 %v797, %v1016
        %1018 = vmatmul.bf16.gmra.mxu0 %v948
        %v1019 = vpop.f32.mrf.mxu0
        %v1020 = vadd.f32 %v800, %v1019
        %v1021 = vpop.f32.mrf.mxu0
        %v1022 = vadd.f32 %v802, %v1021
        %1023 = vmatmul.bf16.gmra.mxu0 %v951
        %v1024 = vpop.f32.mrf.mxu0
        %v1025 = vadd.f32 %v805, %v1024
        %v1026 = vpop.f32.mrf.mxu0
        %v1027 = vadd.f32 %v807, %v1026
        %1028 = vmatmul.bf16.gmra.mxu0 %v954
        %v1029 = vpop.f32.mrf.mxu0
        %v1030 = vadd.f32 %v810, %v1029
        %v1031 = vpop.f32.mrf.mxu0
        %v1032 = vadd.f32 %v812, %v1031
        %1033 = vmatmul.bf16.gmra.mxu0 %v957
        %v1034 = vpop.f32.mrf.mxu0
        %v1035 = vadd.f32 %v815, %v1034
        %v1036 = vpop.f32.mrf.mxu0
        %v1037 = vadd.f32 %v817, %v1036
        %1038 = vmatmul.bf16.gmra.mxu0 %v960
        %v1039 = vpop.f32.mrf.mxu0
        %v1040 = vadd.f32 %v820, %v1039
        %v1041 = vpop.f32.mrf.mxu0
        %v1042 = vadd.f32 %v822, %v1041
        %1043 = vmatmul.bf16.gmra.mxu0 %v963
        %v1044 = vpop.f32.mrf.mxu0
        %v1045 = vadd.f32 %v825, %v1044
        %v1046 = vpop.f32.mrf.mxu0
        %v1047 = vadd.f32 %v827, %v1046
        %1048 = vmatmul.bf16.gmra.mxu0 %v966
        %v1049 = vpop.f32.mrf.mxu0
        %v1050 = vadd.f32 %v830, %v1049
        %v1051 = vpop.f32.mrf.mxu0
        %v1052 = vadd.f32 %v832, %v1051
        %1053 = vmatmul.bf16.gmra.mxu0 %v969
        %v1054 = vpop.f32.mrf.mxu0
        %v1055 = vadd.f32 %v835, %v1054
        %v1056 = vpop.f32.mrf.mxu0
        %v1057 = vadd.f32 %v837, %v1056
        %1058 = vmatmul.bf16.gmra.mxu0 %v972
        %v1059 = vpop.f32.mrf.mxu0
        %v1060 = vadd.f32 %v840, %v1059
        %v1061 = vpop.f32.mrf.mxu0
        %v1062 = vadd.f32 %v842, %v1061
        %1063 = vmatmul.bf16.gmra.mxu0 %v975
        %v1064 = vpop.f32.mrf.mxu0
        %v1065 = vadd.f32 %v845, %v1064
        %v1066 = vpop.f32.mrf.mxu0
        %v1067 = vadd.f32 %v847, %v1066
        %1068 = vdwg.mxu0
        %vm1085 = vcmask 1042432
        %vm1086 = vcmask 1046532
        %vm1087 = vmor %vm1085, %vm1086
        %v1088 = vrot.slane %v215, 5
        %v1089 = vrot.slane %v1088, 4
        %v1090 = vrot.slane %v216, 5
        %v1091 = vsel %vm1087, %v1089, %v1090
        %v1092 = vrot.slane %v1090, 4
        %v1093 = vrot.slane %v217, 5
        %v1094 = vsel %vm1087, %v1092, %v1093
        %v1095 = vrot.slane %v218, 5
        %v1096 = vrot.slane %v1095, 4
        %v1097 = vrot.slane %v219, 5
        %v1098 = vsel %vm1087, %v1096, %v1097
        %v1099 = vrot.slane %v1097, 4
        %v1100 = vrot.slane %v220, 5
        %v1101 = vsel %vm1087, %v1099, %v1100
        %v1102 = vrot.slane %v221, 5
        %v1103 = vrot.slane %v1102, 4
        %v1104 = vrot.slane %v222, 5
        %v1105 = vsel %vm1087, %v1103, %v1104
        %v1106 = vrot.slane %v1104, 4
        %v1107 = vrot.slane %v223, 5
        %v1108 = vsel %vm1087, %v1106, %v1107
        %v1109 = vrot.slane %v224, 5
        %v1110 = vrot.slane %v1109, 4
        %v1111 = vrot.slane %v225, 5
        %v1112 = vsel %vm1087, %v1110, %v1111
        %v1113 = vrot.slane %v1111, 4
        %v1114 = vrot.slane %v226, 5
        %v1115 = vsel %vm1087, %v1113, %v1114
        %v1116 = vrot.slane %v227, 5
        %v1117 = vrot.slane %v1116, 4
        %v1118 = vrot.slane %v228, 5
        %v1119 = vsel %vm1087, %v1117, %v1118
        %v1120 = vrot.slane %v1118, 4
        %v1121 = vrot.slane %v229, 5
        %v1122 = vsel %vm1087, %v1120, %v1121
        %v1123 = vrot.slane %v230, 5
        %v1124 = vrot.slane %v1123, 4
        %v1125 = vrot.slane %v231, 5
        %v1126 = vsel %vm1087, %v1124, %v1125
        %v1127 = vrot.slane %v1125, 4
        %v1128 = vrot.slane %v232, 5
        %v1129 = vsel %vm1087, %v1127, %v1128
        %v1130 = vrot.slane %v233, 5
        %v1131 = vrot.slane %v1130, 4
        %v1132 = vrot.slane %v234, 5
        %v1133 = vsel %vm1087, %v1131, %v1132
        %v1134 = vrot.slane %v1132, 4
        %v1135 = vrot.slane %v235, 5
        %v1136 = vsel %vm1087, %v1134, %v1135
        %v1137 = vrot.slane %v236, 5
        %v1138 = vrot.slane %v1137, 4
        %v1139 = vrot.slane %v237, 5
        %v1140 = vsel %vm1087, %v1138, %v1139
        %v1141 = vrot.slane %v1139, 4
        %v1142 = vrot.slane %v238, 5
        %v1143 = vsel %vm1087, %v1141, %v1142
        %v1144 = vrot.slane %v239, 5
        %v1145 = vrot.slane %v1144, 4
        %v1146 = vrot.slane %v240, 5
        %v1147 = vsel %vm1087, %v1145, %v1146
        %v1148 = vrot.slane %v1146, 4
        %v1149 = vrot.slane %v241, 5
        %v1150 = vsel %vm1087, %v1148, %v1149
        %v1151 = vrot.slane %v242, 5
        %v1152 = vrot.slane %v1151, 4
        %v1153 = vrot.slane %v243, 5
        %v1154 = vsel %vm1087, %v1152, %v1153
        %v1155 = vrot.slane %v1153, 4
        %v1156 = vrot.slane %v244, 5
        %v1157 = vsel %vm1087, %v1155, %v1156
        %v1158 = vrot.slane %v245, 5
        %v1159 = vrot.slane %v1158, 4
        %v1160 = vrot.slane %v246, 5
        %v1161 = vsel %vm1087, %v1159, %v1160
        %v1162 = vrot.slane %v1160, 4
        %v1163 = vrot.slane %v247, 5
        %v1164 = vsel %vm1087, %v1162, %v1163
        %v1165 = vrot.slane %v248, 5
        %v1166 = vrot.slane %v1165, 4
        %v1167 = vrot.slane %v249, 5
        %v1168 = vsel %vm1087, %v1166, %v1167
        %v1169 = vrot.slane %v1167, 4
        %v1170 = vrot.slane %v250, 5
        %v1171 = vsel %vm1087, %v1169, %v1170
        %v1172 = vrot.slane %v251, 5
        %v1173 = vrot.slane %v1172, 4
        %v1174 = vrot.slane %v252, 5
        %v1175 = vsel %vm1087, %v1173, %v1174
        %v1176 = vrot.slane %v1174, 4
        %v1177 = vrot.slane %v253, 5
        %v1178 = vsel %vm1087, %v1176, %v1177
        %v1179 = vrot.slane %v254, 5
        %v1180 = vrot.slane %v1179, 4
        %v1181 = vrot.slane %v255, 5
        %v1182 = vsel %vm1087, %v1180, %v1181
        %v1183 = vrot.slane %v1181, 4
        %v1184 = vrot.slane %v256, 5
        %v1185 = vsel %vm1087, %v1183, %v1184
        %v1186 = vrot.slane %v257, 5
        %v1187 = vrot.slane %v1186, 4
        %v1188 = vrot.slane %v258, 5
        %v1189 = vsel %vm1087, %v1187, %v1188
        %v1190 = vrot.slane %v1188, 4
        %v1191 = vrot.slane %v259, 5
        %v1192 = vsel %vm1087, %v1190, %v1191
        %v1193 = vrot.slane %v260, 5
        %v1194 = vrot.slane %v1193, 4
        %v1195 = vrot.slane %v261, 5
        %v1196 = vsel %vm1087, %v1194, %v1195
        %v1197 = vrot.slane %v1195, 4
        %v1198 = vrot.slane %v262, 5
        %v1199 = vsel %vm1087, %v1197, %v1198
        %s1200 = scalar_lea.vmem %s210, 4
        %v1201 = vld [vmem:[%s1200] sm:$0x3]
        %v1202 = vunpack.c.l.b16 %v1091
        %v1203 = vunpack.c.l.b16 %v1094
        %v1204 = vunpack.c.l.b16 %v1098
        %v1205 = vunpack.c.l.b16 %v1101
        %v1206 = vunpack.c.l.b16 %v1105
        %v1207 = vunpack.c.l.b16 %v1108
        %v1208 = vunpack.c.l.b16 %v1112
        %v1209 = vunpack.c.l.b16 %v1115
        %v1210 = vunpack.c.l.b16 %v1119
        %v1211 = vunpack.c.l.b16 %v1122
        %v1212 = vunpack.c.l.b16 %v1126
        %v1213 = vunpack.c.l.b16 %v1129
        %v1214 = vunpack.c.l.b16 %v1133
        %v1215 = vunpack.c.l.b16 %v1136
        %v1216 = vunpack.c.l.b16 %v1140
        %v1217 = vunpack.c.l.b16 %v1143
        %v1218 = vunpack.c.l.b16 %v1147
        %v1219 = vunpack.c.l.b16 %v1150
        %v1220 = vunpack.c.l.b16 %v1154
        %v1221 = vunpack.c.l.b16 %v1157
        %v1222 = vunpack.c.l.b16 %v1161
        %v1223 = vunpack.c.l.b16 %v1164
        %v1224 = vunpack.c.l.b16 %v1168
        %v1225 = vunpack.c.l.b16 %v1171
        %v1226 = vunpack.c.l.b16 %v1175
        %v1227 = vunpack.c.l.b16 %v1178
        %v1228 = vunpack.c.l.b16 %v1182
        %v1229 = vunpack.c.l.b16 %v1185
        %v1230 = vunpack.c.l.b16 %v1189
        %v1231 = vunpack.c.l.b16 %v1192
        %v1232 = vunpack.c.l.b16 %v1196
        %v1233 = vunpack.c.l.b16 %v1199
        %v1234 = vpack.c.b16 %v1203, %v1202
        %v1235 = vpack.c.b16 %v1205, %v1204
        %v1236 = vpack.c.b16 %v1207, %v1206
        %v1237 = vpack.c.b16 %v1209, %v1208
        %v1238 = vpack.c.b16 %v1211, %v1210
        %v1239 = vpack.c.b16 %v1213, %v1212
        %v1240 = vpack.c.b16 %v1215, %v1214
        %v1241 = vpack.c.b16 %v1217, %v1216
        %v1242 = vpack.c.b16 %v1219, %v1218
        %v1243 = vpack.c.b16 %v1221, %v1220
        %v1244 = vpack.c.b16 %v1223, %v1222
        %v1245 = vpack.c.b16 %v1225, %v1224
        %v1246 = vpack.c.b16 %v1227, %v1226
        %v1247 = vpack.c.b16 %v1229, %v1228
        %v1248 = vpack.c.b16 %v1231, %v1230
        %v1249 = vpack.c.b16 %v1233, %v1232
        %v1251 = vsel %vm707, %v1234, 0
        %v1254 = vsel %vm707, %v1235, 0
        %v1257 = vsel %vm707, %v1236, 0
        %v1260 = vsel %vm707, %v1237, 0
        %v1263 = vsel %vm707, %v1238, 0
        %v1266 = vsel %vm707, %v1239, 0
        %v1269 = vsel %vm707, %v1240, 0
        %v1272 = vsel %vm707, %v1241, 0
        %v1275 = vsel %vm707, %v1242, 0
        %v1278 = vsel %vm707, %v1243, 0
        %v1281 = vsel %vm707, %v1244, 0
        %v1284 = vsel %vm707, %v1245, 0
        %v1287 = vsel %vm707, %v1246, 0
        %v1290 = vsel %vm707, %v1247, 0
        %v1293 = vsel %vm707, %v1248, 0
        %v1296 = vsel %vm707, %v1249, 0
        %v1299 = vsel %vm756, %v1201, 0
        %1301 = vmatpush.bf16.msra.mxu0 0
        %1302 = vmatpush.bf16.msra.mxu0 0
        %1303 = vmatpush.bf16.msra.mxu0 0
        %1304 = vmatpush.bf16.msra.mxu0 0
        %1305 = vmatpush.bf16.msra.mxu0 0
        %1306 = vmatpush.bf16.msra.mxu0 0
        %1307 = vmatpush.bf16.msra.mxu0 0
        %1308 = vmatpush.bf16.msra.mxu0 %v1299
        %1309 = vmatmul.bf16.gmra.mxu0 %v1251
        %v1310 = vpop.f32.mrf.mxu0
        %v1311 = vadd.f32 0.0, %v1310
        %v1312 = vpop.f32.mrf.mxu0
        %v1313 = vadd.f32 0.0, %v1312
        %1314 = vmatmul.bf16.gmra.mxu0 %v1254
        %v1315 = vpop.f32.mrf.mxu0
        %v1316 = vadd.f32 0.0, %v1315
        %v1317 = vpop.f32.mrf.mxu0
        %v1318 = vadd.f32 0.0, %v1317
        %1319 = vmatmul.bf16.gmra.mxu0 %v1257
        %v1320 = vpop.f32.mrf.mxu0
        %v1321 = vadd.f32 0.0, %v1320
        %v1322 = vpop.f32.mrf.mxu0
        %v1323 = vadd.f32 0.0, %v1322
        %1324 = vmatmul.bf16.gmra.mxu0 %v1260
        %v1325 = vpop.f32.mrf.mxu0
        %v1326 = vadd.f32 0.0, %v1325
        %v1327 = vpop.f32.mrf.mxu0
        %v1328 = vadd.f32 0.0, %v1327
        %1329 = vmatmul.bf16.gmra.mxu0 %v1263
        %v1330 = vpop.f32.mrf.mxu0
        %v1331 = vadd.f32 0.0, %v1330
        %v1332 = vpop.f32.mrf.mxu0
        %v1333 = vadd.f32 0.0, %v1332
        %1334 = vmatmul.bf16.gmra.mxu0 %v1266
        %v1335 = vpop.f32.mrf.mxu0
        %v1336 = vadd.f32 0.0, %v1335
        %v1337 = vpop.f32.mrf.mxu0
        %v1338 = vadd.f32 0.0, %v1337
        %1339 = vmatmul.bf16.gmra.mxu0 %v1269
        %v1340 = vpop.f32.mrf.mxu0
        %v1341 = vadd.f32 0.0, %v1340
        %v1342 = vpop.f32.mrf.mxu0
        %v1343 = vadd.f32 0.0, %v1342
        %1344 = vmatmul.bf16.gmra.mxu0 %v1272
        %v1345 = vpop.f32.mrf.mxu0
        %v1346 = vadd.f32 0.0, %v1345
        %v1347 = vpop.f32.mrf.mxu0
        %v1348 = vadd.f32 0.0, %v1347
        %1349 = vmatmul.bf16.gmra.mxu0 %v1275
        %v1350 = vpop.f32.mrf.mxu0
        %v1351 = vadd.f32 0.0, %v1350
        %v1352 = vpop.f32.mrf.mxu0
        %v1353 = vadd.f32 0.0, %v1352
        %1354 = vmatmul.bf16.gmra.mxu0 %v1278
        %v1355 = vpop.f32.mrf.mxu0
        %v1356 = vadd.f32 0.0, %v1355
        %v1357 = vpop.f32.mrf.mxu0
        %v1358 = vadd.f32 0.0, %v1357
        %1359 = vmatmul.bf16.gmra.mxu0 %v1281
        %v1360 = vpop.f32.mrf.mxu0
        %v1361 = vadd.f32 0.0, %v1360
        %v1362 = vpop.f32.mrf.mxu0
        %v1363 = vadd.f32 0.0, %v1362
        %1364 = vmatmul.bf16.gmra.mxu0 %v1284
        %v1365 = vpop.f32.mrf.mxu0
        %v1366 = vadd.f32 0.0, %v1365
        %v1367 = vpop.f32.mrf.mxu0
        %v1368 = vadd.f32 0.0, %v1367
        %1369 = vmatmul.bf16.gmra.mxu0 %v1287
        %v1370 = vpop.f32.mrf.mxu0
        %v1371 = vadd.f32 0.0, %v1370
        %v1372 = vpop.f32.mrf.mxu0
        %v1373 = vadd.f32 0.0, %v1372
        %1374 = vmatmul.bf16.gmra.mxu0 %v1290
        %v1375 = vpop.f32.mrf.mxu0
        %v1376 = vadd.f32 0.0, %v1375
        %v1377 = vpop.f32.mrf.mxu0
        %v1378 = vadd.f32 0.0, %v1377
        %1379 = vmatmul.bf16.gmra.mxu0 %v1293
        %v1380 = vpop.f32.mrf.mxu0
        %v1381 = vadd.f32 0.0, %v1380
        %v1382 = vpop.f32.mrf.mxu0
        %v1383 = vadd.f32 0.0, %v1382
        %1384 = vmatmul.bf16.gmra.mxu0 %v1296
        %v1385 = vpop.f32.mrf.mxu0
        %v1386 = vadd.f32 0.0, %v1385
        %v1387 = vpop.f32.mrf.mxu0
        %v1388 = vadd.f32 0.0, %v1387
        %1389 = vdwg.mxu0
        %v1390 = vadd.f32 %v990, %v1311
        %v1391 = vadd.f32 %v992, %v1313
        %v1392 = vadd.f32 %v995, %v1316
        %v1393 = vadd.f32 %v997, %v1318
        %v1394 = vadd.f32 %v1000, %v1321
        %v1395 = vadd.f32 %v1002, %v1323
        %v1396 = vadd.f32 %v1005, %v1326
        %v1397 = vadd.f32 %v1007, %v1328
        %v1398 = vadd.f32 %v1010, %v1331
        %v1399 = vadd.f32 %v1012, %v1333
        %v1400 = vadd.f32 %v1015, %v1336
        %v1401 = vadd.f32 %v1017, %v1338
        %v1402 = vadd.f32 %v1020, %v1341
        %v1403 = vadd.f32 %v1022, %v1343
        %v1404 = vadd.f32 %v1025, %v1346
        %v1405 = vadd.f32 %v1027, %v1348
        %v1406 = vadd.f32 %v1030, %v1351
        %v1407 = vadd.f32 %v1032, %v1353
        %v1408 = vadd.f32 %v1035, %v1356
        %v1409 = vadd.f32 %v1037, %v1358
        %v1410 = vadd.f32 %v1040, %v1361
        %v1411 = vadd.f32 %v1042, %v1363
        %v1412 = vadd.f32 %v1045, %v1366
        %v1413 = vadd.f32 %v1047, %v1368
        %v1414 = vadd.f32 %v1050, %v1371
        %v1415 = vadd.f32 %v1052, %v1373
        %v1416 = vadd.f32 %v1055, %v1376
        %v1417 = vadd.f32 %v1057, %v1378
        %v1418 = vadd.f32 %v1060, %v1381
        %v1419 = vadd.f32 %v1062, %v1383
        %v1420 = vadd.f32 %v1065, %v1386
        %v1421 = vadd.f32 %v1067, %v1388
        %s1422 = scalar_lea.vmem %s210, 6
        %v1423 = vld [vmem:[%s1422] sm:$0x3]
        %v1426 = vunpack.c.l.b16 %v263
        %v1427 = vunpack.c.l.b16 %v264
        %v1428 = vpack.c.b16 %v1427, %v1426
        %v1430 = vsel %vm707, %v1428, 0
        %v1433 = vsel %vm756, %v1423, 0
        %1435 = vmatpush.bf16.msra.mxu0 0
        %1436 = vmatpush.bf16.msra.mxu0 0
        %1437 = vmatpush.bf16.msra.mxu0 0
        %1438 = vmatpush.bf16.msra.mxu0 0
        %1439 = vmatpush.bf16.msra.mxu0 0
        %1440 = vmatpush.bf16.msra.mxu0 0
        %1441 = vmatpush.bf16.msra.mxu0 0
        %1442 = vmatpush.bf16.msra.mxu0 %v1433
        %1443 = vmatmul.bf16.gmra.mxu0 %v933
        %v1444 = vpop.f32.mrf.mxu0
        %v1445 = vadd.f32 0.0, %v1444
        %v1446 = vpop.f32.mrf.mxu0
        %v1447 = vadd.f32 0.0, %v1446
        %1448 = vmatmul.bf16.gmra.mxu0 %v936
        %v1449 = vpop.f32.mrf.mxu0
        %v1450 = vadd.f32 0.0, %v1449
        %v1451 = vpop.f32.mrf.mxu0
        %v1452 = vadd.f32 0.0, %v1451
        %1453 = vmatmul.bf16.gmra.mxu0 %v939
        %v1454 = vpop.f32.mrf.mxu0
        %v1455 = vadd.f32 0.0, %v1454
        %v1456 = vpop.f32.mrf.mxu0
        %v1457 = vadd.f32 0.0, %v1456
        %1458 = vmatmul.bf16.gmra.mxu0 %v942
        %v1459 = vpop.f32.mrf.mxu0
        %v1460 = vadd.f32 0.0, %v1459
        %v1461 = vpop.f32.mrf.mxu0
        %v1462 = vadd.f32 0.0, %v1461
        %1463 = vmatmul.bf16.gmra.mxu0 %v945
        %v1464 = vpop.f32.mrf.mxu0
        %v1465 = vadd.f32 0.0, %v1464
        %v1466 = vpop.f32.mrf.mxu0
        %v1467 = vadd.f32 0.0, %v1466
        %1468 = vmatmul.bf16.gmra.mxu0 %v948
        %v1469 = vpop.f32.mrf.mxu0
        %v1470 = vadd.f32 0.0, %v1469
        %v1471 = vpop.f32.mrf.mxu0
        %v1472 = vadd.f32 0.0, %v1471
        %1473 = vmatmul.bf16.gmra.mxu0 %v951
        %v1474 = vpop.f32.mrf.mxu0
        %v1475 = vadd.f32 0.0, %v1474
        %v1476 = vpop.f32.mrf.mxu0
        %v1477 = vadd.f32 0.0, %v1476
        %1478 = vmatmul.bf16.gmra.mxu0 %v954
        %v1479 = vpop.f32.mrf.mxu0
        %v1480 = vadd.f32 0.0, %v1479
        %v1481 = vpop.f32.mrf.mxu0
        %v1482 = vadd.f32 0.0, %v1481
        %1483 = vmatmul.bf16.gmra.mxu0 %v957
        %v1484 = vpop.f32.mrf.mxu0
        %v1485 = vadd.f32 0.0, %v1484
        %v1486 = vpop.f32.mrf.mxu0
        %v1487 = vadd.f32 0.0, %v1486
        %1488 = vmatmul.bf16.gmra.mxu0 %v960
        %v1489 = vpop.f32.mrf.mxu0
        %v1490 = vadd.f32 0.0, %v1489
        %v1491 = vpop.f32.mrf.mxu0
        %v1492 = vadd.f32 0.0, %v1491
        %1493 = vmatmul.bf16.gmra.mxu0 %v963
        %v1494 = vpop.f32.mrf.mxu0
        %v1495 = vadd.f32 0.0, %v1494
        %v1496 = vpop.f32.mrf.mxu0
        %v1497 = vadd.f32 0.0, %v1496
        %1498 = vmatmul.bf16.gmra.mxu0 %v966
        %v1499 = vpop.f32.mrf.mxu0
        %v1500 = vadd.f32 0.0, %v1499
        %v1501 = vpop.f32.mrf.mxu0
        %v1502 = vadd.f32 0.0, %v1501
        %1503 = vmatmul.bf16.gmra.mxu0 %v969
        %v1504 = vpop.f32.mrf.mxu0
        %v1505 = vadd.f32 0.0, %v1504
        %v1506 = vpop.f32.mrf.mxu0
        %v1507 = vadd.f32 0.0, %v1506
        %1508 = vmatmul.bf16.gmra.mxu0 %v972
        %v1509 = vpop.f32.mrf.mxu0
        %v1510 = vadd.f32 0.0, %v1509
        %v1511 = vpop.f32.mrf.mxu0
        %v1512 = vadd.f32 0.0, %v1511
        %1513 = vmatmul.bf16.gmra.mxu0 %v975
        %v1514 = vpop.f32.mrf.mxu0
        %v1515 = vadd.f32 0.0, %v1514
        %v1516 = vpop.f32.mrf.mxu0
        %v1517 = vadd.f32 0.0, %v1516
        %1518 = vmatmul.bf16.gmra.mxu0 %v1430
        %v1519 = vpop.f32.mrf.mxu0
        %v1520 = vadd.f32 0.0, %v1519
        %v1521 = vpop.f32.mrf.mxu0
        %v1522 = vadd.f32 0.0, %v1521
        %1523 = vdwg.mxu0
        %v1524 = vadd.f32 %v1390, %v1445
        %v1525 = vadd.f32 %v1391, %v1447
        %v1526 = vadd.f32 %v1392, %v1450
        %v1527 = vadd.f32 %v1393, %v1452
        %v1528 = vadd.f32 %v1394, %v1455
        %v1529 = vadd.f32 %v1395, %v1457
        %v1530 = vadd.f32 %v1396, %v1460
        %v1531 = vadd.f32 %v1397, %v1462
        %v1532 = vadd.f32 %v1398, %v1465
        %v1533 = vadd.f32 %v1399, %v1467
        %v1534 = vadd.f32 %v1400, %v1470
        %v1535 = vadd.f32 %v1401, %v1472
        %v1536 = vadd.f32 %v1402, %v1475
        %v1537 = vadd.f32 %v1403, %v1477
        %v1538 = vadd.f32 %v1404, %v1480
        %v1539 = vadd.f32 %v1405, %v1482
        %v1540 = vadd.f32 %v1406, %v1485
        %v1541 = vadd.f32 %v1407, %v1487
        %v1542 = vadd.f32 %v1408, %v1490
        %v1543 = vadd.f32 %v1409, %v1492
        %v1544 = vadd.f32 %v1410, %v1495
        %v1545 = vadd.f32 %v1411, %v1497
        %v1546 = vadd.f32 %v1412, %v1500
        %v1547 = vadd.f32 %v1413, %v1502
        %v1548 = vadd.f32 %v1414, %v1505
        %v1549 = vadd.f32 %v1415, %v1507
        %v1550 = vadd.f32 %v1416, %v1510
        %v1551 = vadd.f32 %v1417, %v1512
        %v1552 = vadd.f32 %v1418, %v1515
        %v1553 = vadd.f32 %v1419, %v1517
        %v1554 = vadd.f32 %v1420, %v1520
        %v1555 = vadd.f32 %v1421, %v1522
        %v1557 = vshrl.u32 %v263, 16
        %v1559 = vrot.slane %v1557, 4
        %v1560 = vshll.u32 %v263, 16
        %v1562 = vrot.slane %v1560, 5
        %v1563 = vor.u32 %v1559, %v1562
        %v1564 = vrot.slane %v1563, 4
        %v1566 = vshll.u32 %v264, 16
        %v1568 = vrot.slane %v1566, 5
        %v1569 = vsel %vm272, %v1564, %v1568
        %v1570 = vshrl.u32 %v264, 16
        %v1572 = vrot.slane %v1570, 4
        %v1573 = vor.u32 %v1572, %v1568
        %v1574 = vrot.slane %v1573, 4
        %v1576 = vshll.u32 %v265, 16
        %v1578 = vrot.slane %v1576, 5
        %v1579 = vsel %vm272, %v1574, %v1578
        %s1580 = scalar_lea.vmem %s210, 8
        %v1581 = vld [vmem:[%s1580] sm:$0x3]
        %v1582 = vunpack.c.l.b16 %v1569
        %v1583 = vunpack.c.l.b16 %v1579
        %v1584 = vpack.c.b16 %v1583, %v1582
        %v1586 = vsel %vm707, %v1584, 0
        %v1589 = vsel %vm756, %v1581, 0
        %1591 = vmatpush.bf16.msra.mxu0 0
        %1592 = vmatpush.bf16.msra.mxu0 0
        %1593 = vmatpush.bf16.msra.mxu0 0
        %1594 = vmatpush.bf16.msra.mxu0 0
        %1595 = vmatpush.bf16.msra.mxu0 0
        %1596 = vmatpush.bf16.msra.mxu0 0
        %1597 = vmatpush.bf16.msra.mxu0 0
        %1598 = vmatpush.bf16.msra.mxu0 %v1589
        %1599 = vmatmul.bf16.gmra.mxu0 %v712
        %v1600 = vpop.f32.mrf.mxu0
        %v1601 = vadd.f32 0.0, %v1600
        %v1602 = vpop.f32.mrf.mxu0
        %v1603 = vadd.f32 0.0, %v1602
        %1604 = vmatmul.bf16.gmra.mxu0 %v715
        %v1605 = vpop.f32.mrf.mxu0
        %v1606 = vadd.f32 0.0, %v1605
        %v1607 = vpop.f32.mrf.mxu0
        %v1608 = vadd.f32 0.0, %v1607
        %1609 = vmatmul.bf16.gmra.mxu0 %v718
        %v1610 = vpop.f32.mrf.mxu0
        %v1611 = vadd.f32 0.0, %v1610
        %v1612 = vpop.f32.mrf.mxu0
        %v1613 = vadd.f32 0.0, %v1612
        %1614 = vmatmul.bf16.gmra.mxu0 %v721
        %v1615 = vpop.f32.mrf.mxu0
        %v1616 = vadd.f32 0.0, %v1615
        %v1617 = vpop.f32.mrf.mxu0
        %v1618 = vadd.f32 0.0, %v1617
        %1619 = vmatmul.bf16.gmra.mxu0 %v724
        %v1620 = vpop.f32.mrf.mxu0
        %v1621 = vadd.f32 0.0, %v1620
        %v1622 = vpop.f32.mrf.mxu0
        %v1623 = vadd.f32 0.0, %v1622
        %1624 = vmatmul.bf16.gmra.mxu0 %v727
        %v1625 = vpop.f32.mrf.mxu0
        %v1626 = vadd.f32 0.0, %v1625
        %v1627 = vpop.f32.mrf.mxu0
        %v1628 = vadd.f32 0.0, %v1627
        %1629 = vmatmul.bf16.gmra.mxu0 %v730
        %v1630 = vpop.f32.mrf.mxu0
        %v1631 = vadd.f32 0.0, %v1630
        %v1632 = vpop.f32.mrf.mxu0
        %v1633 = vadd.f32 0.0, %v1632
        %1634 = vmatmul.bf16.gmra.mxu0 %v733
        %v1635 = vpop.f32.mrf.mxu0
        %v1636 = vadd.f32 0.0, %v1635
        %v1637 = vpop.f32.mrf.mxu0
        %v1638 = vadd.f32 0.0, %v1637
        %1639 = vmatmul.bf16.gmra.mxu0 %v736
        %v1640 = vpop.f32.mrf.mxu0
        %v1641 = vadd.f32 0.0, %v1640
        %v1642 = vpop.f32.mrf.mxu0
        %v1643 = vadd.f32 0.0, %v1642
        %1644 = vmatmul.bf16.gmra.mxu0 %v739
        %v1645 = vpop.f32.mrf.mxu0
        %v1646 = vadd.f32 0.0, %v1645
        %v1647 = vpop.f32.mrf.mxu0
        %v1648 = vadd.f32 0.0, %v1647
        %1649 = vmatmul.bf16.gmra.mxu0 %v742
        %v1650 = vpop.f32.mrf.mxu0
        %v1651 = vadd.f32 0.0, %v1650
        %v1652 = vpop.f32.mrf.mxu0
        %v1653 = vadd.f32 0.0, %v1652
        %1654 = vmatmul.bf16.gmra.mxu0 %v745
        %v1655 = vpop.f32.mrf.mxu0
        %v1656 = vadd.f32 0.0, %v1655
        %v1657 = vpop.f32.mrf.mxu0
        %v1658 = vadd.f32 0.0, %v1657
        %1659 = vmatmul.bf16.gmra.mxu0 %v748
        %v1660 = vpop.f32.mrf.mxu0
        %v1661 = vadd.f32 0.0, %v1660
        %v1662 = vpop.f32.mrf.mxu0
        %v1663 = vadd.f32 0.0, %v1662
        %1664 = vmatmul.bf16.gmra.mxu0 %v751
        %v1665 = vpop.f32.mrf.mxu0
        %v1666 = vadd.f32 0.0, %v1665
        %v1667 = vpop.f32.mrf.mxu0
        %v1668 = vadd.f32 0.0, %v1667
        %1669 = vmatmul.bf16.gmra.mxu0 %v754
        %v1670 = vpop.f32.mrf.mxu0
        %v1671 = vadd.f32 0.0, %v1670
        %v1672 = vpop.f32.mrf.mxu0
        %v1673 = vadd.f32 0.0, %v1672
        %1674 = vmatmul.bf16.gmra.mxu0 %v1586
        %v1675 = vpop.f32.mrf.mxu0
        %v1676 = vadd.f32 0.0, %v1675
        %v1677 = vpop.f32.mrf.mxu0
        %v1678 = vadd.f32 0.0, %v1677
        %1679 = vdwg.mxu0
        %v1680 = vadd.f32 %v1524, %v1601
        %v1681 = vadd.f32 %v1525, %v1603
        %v1682 = vadd.f32 %v1526, %v1606
        %v1683 = vadd.f32 %v1527, %v1608
        %v1684 = vadd.f32 %v1528, %v1611
        %v1685 = vadd.f32 %v1529, %v1613
        %v1686 = vadd.f32 %v1530, %v1616
        %v1687 = vadd.f32 %v1531, %v1618
        %v1688 = vadd.f32 %v1532, %v1621
        %v1689 = vadd.f32 %v1533, %v1623
        %v1690 = vadd.f32 %v1534, %v1626
        %v1691 = vadd.f32 %v1535, %v1628
        %v1692 = vadd.f32 %v1536, %v1631
        %v1693 = vadd.f32 %v1537, %v1633
        %v1694 = vadd.f32 %v1538, %v1636
        %v1695 = vadd.f32 %v1539, %v1638
        %v1696 = vadd.f32 %v1540, %v1641
        %v1697 = vadd.f32 %v1541, %v1643
        %v1698 = vadd.f32 %v1542, %v1646
        %v1699 = vadd.f32 %v1543, %v1648
        %v1700 = vadd.f32 %v1544, %v1651
        %v1701 = vadd.f32 %v1545, %v1653
        %v1702 = vadd.f32 %v1546, %v1656
        %v1703 = vadd.f32 %v1547, %v1658
        %v1704 = vadd.f32 %v1548, %v1661
        %v1705 = vadd.f32 %v1549, %v1663
        %v1706 = vadd.f32 %v1550, %v1666
        %v1707 = vadd.f32 %v1551, %v1668
        %v1708 = vadd.f32 %v1552, %v1671
        %v1709 = vadd.f32 %v1553, %v1673
        %v1710 = vadd.f32 %v1554, %v1676
        %v1711 = vadd.f32 %v1555, %v1678
        %v1713 = vrot.slane %v263, 5
        %v1714 = vrot.slane %v1713, 4
        %v1715 = vrot.slane %v264, 5
        %v1716 = vsel %vm1087, %v1714, %v1715
        %v1717 = vrot.slane %v1715, 4
        %v1718 = vrot.slane %v265, 5
        %v1719 = vsel %vm1087, %v1717, %v1718
        %s1720 = scalar_lea.vmem %s210, 10
        %v1721 = vld [vmem:[%s1720] sm:$0x3]
        %v1722 = vunpack.c.l.b16 %v1716
        %v1723 = vunpack.c.l.b16 %v1719
        %v1724 = vpack.c.b16 %v1723, %v1722
        %v1726 = vsel %vm707, %v1724, 0
        %v1729 = vsel %vm756, %v1721, 0
        %1731 = vmatpush.bf16.msra.mxu0 0
        %1732 = vmatpush.bf16.msra.mxu0 0
        %1733 = vmatpush.bf16.msra.mxu0 0
        %1734 = vmatpush.bf16.msra.mxu0 0
        %1735 = vmatpush.bf16.msra.mxu0 0
        %1736 = vmatpush.bf16.msra.mxu0 0
        %1737 = vmatpush.bf16.msra.mxu0 0
        %1738 = vmatpush.bf16.msra.mxu0 %v1729
        %1739 = vmatmul.bf16.gmra.mxu0 %v1254
        %v1740 = vpop.f32.mrf.mxu0
        %v1741 = vadd.f32 0.0, %v1740
        %v1742 = vpop.f32.mrf.mxu0
        %v1743 = vadd.f32 0.0, %v1742
        %1744 = vmatmul.bf16.gmra.mxu0 %v1257
        %v1745 = vpop.f32.mrf.mxu0
        %v1746 = vadd.f32 0.0, %v1745
        %v1747 = vpop.f32.mrf.mxu0
        %v1748 = vadd.f32 0.0, %v1747
        %1749 = vmatmul.bf16.gmra.mxu0 %v1260
        %v1750 = vpop.f32.mrf.mxu0
        %v1751 = vadd.f32 0.0, %v1750
        %v1752 = vpop.f32.mrf.mxu0
        %v1753 = vadd.f32 0.0, %v1752
        %1754 = vmatmul.bf16.gmra.mxu0 %v1263
        %v1755 = vpop.f32.mrf.mxu0
        %v1756 = vadd.f32 0.0, %v1755
        %v1757 = vpop.f32.mrf.mxu0
        %v1758 = vadd.f32 0.0, %v1757
        %1759 = vmatmul.bf16.gmra.mxu0 %v1266
        %v1760 = vpop.f32.mrf.mxu0
        %v1761 = vadd.f32 0.0, %v1760
        %v1762 = vpop.f32.mrf.mxu0
        %v1763 = vadd.f32 0.0, %v1762
        %1764 = vmatmul.bf16.gmra.mxu0 %v1269
        %v1765 = vpop.f32.mrf.mxu0
        %v1766 = vadd.f32 0.0, %v1765
        %v1767 = vpop.f32.mrf.mxu0
        %v1768 = vadd.f32 0.0, %v1767
        %1769 = vmatmul.bf16.gmra.mxu0 %v1272
        %v1770 = vpop.f32.mrf.mxu0
        %v1771 = vadd.f32 0.0, %v1770
        %v1772 = vpop.f32.mrf.mxu0
        %v1773 = vadd.f32 0.0, %v1772
        %1774 = vmatmul.bf16.gmra.mxu0 %v1275
        %v1775 = vpop.f32.mrf.mxu0
        %v1776 = vadd.f32 0.0, %v1775
        %v1777 = vpop.f32.mrf.mxu0
        %v1778 = vadd.f32 0.0, %v1777
        %1779 = vmatmul.bf16.gmra.mxu0 %v1278
        %v1780 = vpop.f32.mrf.mxu0
        %v1781 = vadd.f32 0.0, %v1780
        %v1782 = vpop.f32.mrf.mxu0
        %v1783 = vadd.f32 0.0, %v1782
        %1784 = vmatmul.bf16.gmra.mxu0 %v1281
        %v1785 = vpop.f32.mrf.mxu0
        %v1786 = vadd.f32 0.0, %v1785
        %v1787 = vpop.f32.mrf.mxu0
        %v1788 = vadd.f32 0.0, %v1787
        %1789 = vmatmul.bf16.gmra.mxu0 %v1284
        %v1790 = vpop.f32.mrf.mxu0
        %v1791 = vadd.f32 0.0, %v1790
        %v1792 = vpop.f32.mrf.mxu0
        %v1793 = vadd.f32 0.0, %v1792
        %1794 = vmatmul.bf16.gmra.mxu0 %v1287
        %v1795 = vpop.f32.mrf.mxu0
        %v1796 = vadd.f32 0.0, %v1795
        %v1797 = vpop.f32.mrf.mxu0
        %v1798 = vadd.f32 0.0, %v1797
        %1799 = vmatmul.bf16.gmra.mxu0 %v1290
        %v1800 = vpop.f32.mrf.mxu0
        %v1801 = vadd.f32 0.0, %v1800
        %v1802 = vpop.f32.mrf.mxu0
        %v1803 = vadd.f32 0.0, %v1802
        %1804 = vmatmul.bf16.gmra.mxu0 %v1293
        %v1805 = vpop.f32.mrf.mxu0
        %v1806 = vadd.f32 0.0, %v1805
        %v1807 = vpop.f32.mrf.mxu0
        %v1808 = vadd.f32 0.0, %v1807
        %1809 = vmatmul.bf16.gmra.mxu0 %v1296
        %v1810 = vpop.f32.mrf.mxu0
        %v1811 = vadd.f32 0.0, %v1810
        %v1812 = vpop.f32.mrf.mxu0
        %v1813 = vadd.f32 0.0, %v1812
        %1814 = vmatmul.bf16.gmra.mxu0 %v1726
        %v1815 = vpop.f32.mrf.mxu0
        %v1816 = vadd.f32 0.0, %v1815
        %v1817 = vpop.f32.mrf.mxu0
        %v1818 = vadd.f32 0.0, %v1817
        %1819 = vdwg.mxu0
        %v1820 = vadd.f32 %v1680, %v1741
        %v1821 = vadd.f32 %v1681, %v1743
        %v1822 = vadd.f32 %v1682, %v1746
        %v1823 = vadd.f32 %v1683, %v1748
        %v1824 = vadd.f32 %v1684, %v1751
        %v1825 = vadd.f32 %v1685, %v1753
        %v1826 = vadd.f32 %v1686, %v1756
        %v1827 = vadd.f32 %v1687, %v1758
        %v1828 = vadd.f32 %v1688, %v1761
        %v1829 = vadd.f32 %v1689, %v1763
        %v1830 = vadd.f32 %v1690, %v1766
        %v1831 = vadd.f32 %v1691, %v1768
        %v1832 = vadd.f32 %v1692, %v1771
        %v1833 = vadd.f32 %v1693, %v1773
        %v1834 = vadd.f32 %v1694, %v1776
        %v1835 = vadd.f32 %v1695, %v1778
        %v1836 = vadd.f32 %v1696, %v1781
        %v1837 = vadd.f32 %v1697, %v1783
        %v1838 = vadd.f32 %v1698, %v1786
        %v1839 = vadd.f32 %v1699, %v1788
        %v1840 = vadd.f32 %v1700, %v1791
        %v1841 = vadd.f32 %v1701, %v1793
        %v1842 = vadd.f32 %v1702, %v1796
        %v1843 = vadd.f32 %v1703, %v1798
        %v1844 = vadd.f32 %v1704, %v1801
        %v1845 = vadd.f32 %v1705, %v1803
        %v1846 = vadd.f32 %v1706, %v1806
        %v1847 = vadd.f32 %v1707, %v1808
        %v1848 = vadd.f32 %v1708, %v1811
        %v1849 = vadd.f32 %v1709, %v1813
        %v1850 = vadd.f32 %v1710, %v1816
        %v1851 = vadd.f32 %v1711, %v1818
        %s1852 = scalar_lea.vmem %s210, 12
        %v1853 = vld [vmem:[%s1852] sm:$0x3]
        %v1856 = vunpack.c.l.b16 %v266
        %v1857 = vunpack.c.l.b16 %v267
        %v1858 = vpack.c.b16 %v1857, %v1856
        %v1860 = vsel %vm707, %v1858, 0
        %v1863 = vsel %vm756, %v1853, 0
        %1865 = vmatpush.bf16.msra.mxu0 0
        %1866 = vmatpush.bf16.msra.mxu0 0
        %1867 = vmatpush.bf16.msra.mxu0 0
        %1868 = vmatpush.bf16.msra.mxu0 0
        %1869 = vmatpush.bf16.msra.mxu0 0
        %1870 = vmatpush.bf16.msra.mxu0 0
        %1871 = vmatpush.bf16.msra.mxu0 0
        %1872 = vmatpush.bf16.msra.mxu0 %v1863
        %1873 = vmatmul.bf16.gmra.mxu0 %v936
        %v1874 = vpop.f32.mrf.mxu0
        %v1875 = vadd.f32 0.0, %v1874
        %v1876 = vpop.f32.mrf.mxu0
        %v1877 = vadd.f32 0.0, %v1876
        %1878 = vmatmul.bf16.gmra.mxu0 %v939
        %v1879 = vpop.f32.mrf.mxu0
        %v1880 = vadd.f32 0.0, %v1879
        %v1881 = vpop.f32.mrf.mxu0
        %v1882 = vadd.f32 0.0, %v1881
        %1883 = vmatmul.bf16.gmra.mxu0 %v942
        %v1884 = vpop.f32.mrf.mxu0
        %v1885 = vadd.f32 0.0, %v1884
        %v1886 = vpop.f32.mrf.mxu0
        %v1887 = vadd.f32 0.0, %v1886
        %1888 = vmatmul.bf16.gmra.mxu0 %v945
        %v1889 = vpop.f32.mrf.mxu0
        %v1890 = vadd.f32 0.0, %v1889
        %v1891 = vpop.f32.mrf.mxu0
        %v1892 = vadd.f32 0.0, %v1891
        %1893 = vmatmul.bf16.gmra.mxu0 %v948
        %v1894 = vpop.f32.mrf.mxu0
        %v1895 = vadd.f32 0.0, %v1894
        %v1896 = vpop.f32.mrf.mxu0
        %v1897 = vadd.f32 0.0, %v1896
        %1898 = vmatmul.bf16.gmra.mxu0 %v951
        %v1899 = vpop.f32.mrf.mxu0
        %v1900 = vadd.f32 0.0, %v1899
        %v1901 = vpop.f32.mrf.mxu0
        %v1902 = vadd.f32 0.0, %v1901
        %1903 = vmatmul.bf16.gmra.mxu0 %v954
        %v1904 = vpop.f32.mrf.mxu0
        %v1905 = vadd.f32 0.0, %v1904
        %v1906 = vpop.f32.mrf.mxu0
        %v1907 = vadd.f32 0.0, %v1906
        %1908 = vmatmul.bf16.gmra.mxu0 %v957
        %v1909 = vpop.f32.mrf.mxu0
        %v1910 = vadd.f32 0.0, %v1909
        %v1911 = vpop.f32.mrf.mxu0
        %v1912 = vadd.f32 0.0, %v1911
        %1913 = vmatmul.bf16.gmra.mxu0 %v960
        %v1914 = vpop.f32.mrf.mxu0
        %v1915 = vadd.f32 0.0, %v1914
        %v1916 = vpop.f32.mrf.mxu0
        %v1917 = vadd.f32 0.0, %v1916
        %1918 = vmatmul.bf16.gmra.mxu0 %v963
        %v1919 = vpop.f32.mrf.mxu0
        %v1920 = vadd.f32 0.0, %v1919
        %v1921 = vpop.f32.mrf.mxu0
        %v1922 = vadd.f32 0.0, %v1921
        %1923 = vmatmul.bf16.gmra.mxu0 %v966
        %v1924 = vpop.f32.mrf.mxu0
        %v1925 = vadd.f32 0.0, %v1924
        %v1926 = vpop.f32.mrf.mxu0
        %v1927 = vadd.f32 0.0, %v1926
        %1928 = vmatmul.bf16.gmra.mxu0 %v969
        %v1929 = vpop.f32.mrf.mxu0
        %v1930 = vadd.f32 0.0, %v1929
        %v1931 = vpop.f32.mrf.mxu0
        %v1932 = vadd.f32 0.0, %v1931
        %1933 = vmatmul.bf16.gmra.mxu0 %v972
        %v1934 = vpop.f32.mrf.mxu0
        %v1935 = vadd.f32 0.0, %v1934
        %v1936 = vpop.f32.mrf.mxu0
        %v1937 = vadd.f32 0.0, %v1936
        %1938 = vmatmul.bf16.gmra.mxu0 %v975
        %v1939 = vpop.f32.mrf.mxu0
        %v1940 = vadd.f32 0.0, %v1939
        %v1941 = vpop.f32.mrf.mxu0
        %v1942 = vadd.f32 0.0, %v1941
        %1943 = vmatmul.bf16.gmra.mxu0 %v1430
        %v1944 = vpop.f32.mrf.mxu0
        %v1945 = vadd.f32 0.0, %v1944
        %v1946 = vpop.f32.mrf.mxu0
        %v1947 = vadd.f32 0.0, %v1946
        %1948 = vmatmul.bf16.gmra.mxu0 %v1860
        %v1949 = vpop.f32.mrf.mxu0
        %v1950 = vadd.f32 0.0, %v1949
        %v1951 = vpop.f32.mrf.mxu0
        %v1952 = vadd.f32 0.0, %v1951
        %1953 = vdwg.mxu0
        %v1954 = vadd.f32 %v1820, %v1875
        %v1955 = vadd.f32 %v1821, %v1877
        %v1956 = vadd.f32 %v1822, %v1880
        %v1957 = vadd.f32 %v1823, %v1882
        %v1958 = vadd.f32 %v1824, %v1885
        %v1959 = vadd.f32 %v1825, %v1887
        %v1960 = vadd.f32 %v1826, %v1890
        %v1961 = vadd.f32 %v1827, %v1892
        %v1962 = vadd.f32 %v1828, %v1895
        %v1963 = vadd.f32 %v1829, %v1897
        %v1964 = vadd.f32 %v1830, %v1900
        %v1965 = vadd.f32 %v1831, %v1902
        %v1966 = vadd.f32 %v1832, %v1905
        %v1967 = vadd.f32 %v1833, %v1907
        %v1968 = vadd.f32 %v1834, %v1910
        %v1969 = vadd.f32 %v1835, %v1912
        %v1970 = vadd.f32 %v1836, %v1915
        %v1971 = vadd.f32 %v1837, %v1917
        %v1972 = vadd.f32 %v1838, %v1920
        %v1973 = vadd.f32 %v1839, %v1922
        %v1974 = vadd.f32 %v1840, %v1925
        %v1975 = vadd.f32 %v1841, %v1927
        %v1976 = vadd.f32 %v1842, %v1930
        %v1977 = vadd.f32 %v1843, %v1932
        %v1978 = vadd.f32 %v1844, %v1935
        %v1979 = vadd.f32 %v1845, %v1937
        %v1980 = vadd.f32 %v1846, %v1940
        %v1981 = vadd.f32 %v1847, %v1942
        %v1982 = vadd.f32 %v1848, %v1945
        %v1983 = vadd.f32 %v1849, %v1947
        %v1984 = vadd.f32 %v1850, %v1950
        %v1985 = vadd.f32 %v1851, %v1952
        %v1987 = vshrl.u32 %v266, 16
        %v1989 = vrot.slane %v1987, 4
        %v1990 = vshll.u32 %v266, 16
        %v1992 = vrot.slane %v1990, 5
        %v1993 = vor.u32 %v1989, %v1992
        %v1994 = vrot.slane %v1993, 4
        %v1996 = vshll.u32 %v267, 16
        %v1998 = vrot.slane %v1996, 5
        %v1999 = vsel %vm272, %v1994, %v1998
        %v2000 = vshrl.u32 %v267, 16
        %v2002 = vrot.slane %v2000, 4
        %v2003 = vor.u32 %v2002, %v1998
        %v2004 = vrot.slane %v2003, 4
        %v2006 = vshll.u32 %v268, 16
        %v2008 = vrot.slane %v2006, 5
        %v2009 = vsel %vm272, %v2004, %v2008
        %s2010 = scalar_lea.vmem %s210, 14
        %v2011 = vld [vmem:[%s2010] sm:$0x3]
        %v2012 = vunpack.c.l.b16 %v1999
        %v2013 = vunpack.c.l.b16 %v2009
        %v2014 = vpack.c.b16 %v2013, %v2012
        %v2016 = vsel %vm707, %v2014, 0
        %v2019 = vsel %vm756, %v2011, 0
        %2021 = vmatpush.bf16.msra.mxu0 0
        %2022 = vmatpush.bf16.msra.mxu0 0
        %2023 = vmatpush.bf16.msra.mxu0 0
        %2024 = vmatpush.bf16.msra.mxu0 0
        %2025 = vmatpush.bf16.msra.mxu0 0
        %2026 = vmatpush.bf16.msra.mxu0 0
        %2027 = vmatpush.bf16.msra.mxu0 0
        %2028 = vmatpush.bf16.msra.mxu0 %v2019
        %2029 = vmatmul.bf16.gmra.mxu0 %v715
        %v2030 = vpop.f32.mrf.mxu0
        %v2031 = vadd.f32 0.0, %v2030
        %v2032 = vpop.f32.mrf.mxu0
        %v2033 = vadd.f32 0.0, %v2032
        %2034 = vmatmul.bf16.gmra.mxu0 %v718
        %v2035 = vpop.f32.mrf.mxu0
        %v2036 = vadd.f32 0.0, %v2035
        %v2037 = vpop.f32.mrf.mxu0
        %v2038 = vadd.f32 0.0, %v2037
        %2039 = vmatmul.bf16.gmra.mxu0 %v721
        %v2040 = vpop.f32.mrf.mxu0
        %v2041 = vadd.f32 0.0, %v2040
        %v2042 = vpop.f32.mrf.mxu0
        %v2043 = vadd.f32 0.0, %v2042
        %2044 = vmatmul.bf16.gmra.mxu0 %v724
        %v2045 = vpop.f32.mrf.mxu0
        %v2046 = vadd.f32 0.0, %v2045
        %v2047 = vpop.f32.mrf.mxu0
        %v2048 = vadd.f32 0.0, %v2047
        %2049 = vmatmul.bf16.gmra.mxu0 %v727
        %v2050 = vpop.f32.mrf.mxu0
        %v2051 = vadd.f32 0.0, %v2050
        %v2052 = vpop.f32.mrf.mxu0
        %v2053 = vadd.f32 0.0, %v2052
        %2054 = vmatmul.bf16.gmra.mxu0 %v730
        %v2055 = vpop.f32.mrf.mxu0
        %v2056 = vadd.f32 0.0, %v2055
        %v2057 = vpop.f32.mrf.mxu0
        %v2058 = vadd.f32 0.0, %v2057
        %2059 = vmatmul.bf16.gmra.mxu0 %v733
        %v2060 = vpop.f32.mrf.mxu0
        %v2061 = vadd.f32 0.0, %v2060
        %v2062 = vpop.f32.mrf.mxu0
        %v2063 = vadd.f32 0.0, %v2062
        %2064 = vmatmul.bf16.gmra.mxu0 %v736
        %v2065 = vpop.f32.mrf.mxu0
        %v2066 = vadd.f32 0.0, %v2065
        %v2067 = vpop.f32.mrf.mxu0
        %v2068 = vadd.f32 0.0, %v2067
        %2069 = vmatmul.bf16.gmra.mxu0 %v739
        %v2070 = vpop.f32.mrf.mxu0
        %v2071 = vadd.f32 0.0, %v2070
        %v2072 = vpop.f32.mrf.mxu0
        %v2073 = vadd.f32 0.0, %v2072
        %2074 = vmatmul.bf16.gmra.mxu0 %v742
        %v2075 = vpop.f32.mrf.mxu0
        %v2076 = vadd.f32 0.0, %v2075
        %v2077 = vpop.f32.mrf.mxu0
        %v2078 = vadd.f32 0.0, %v2077
        %2079 = vmatmul.bf16.gmra.mxu0 %v745
        %v2080 = vpop.f32.mrf.mxu0
        %v2081 = vadd.f32 0.0, %v2080
        %v2082 = vpop.f32.mrf.mxu0
        %v2083 = vadd.f32 0.0, %v2082
        %2084 = vmatmul.bf16.gmra.mxu0 %v748
        %v2085 = vpop.f32.mrf.mxu0
        %v2086 = vadd.f32 0.0, %v2085
        %v2087 = vpop.f32.mrf.mxu0
        %v2088 = vadd.f32 0.0, %v2087
        %2089 = vmatmul.bf16.gmra.mxu0 %v751
        %v2090 = vpop.f32.mrf.mxu0
        %v2091 = vadd.f32 0.0, %v2090
        %v2092 = vpop.f32.mrf.mxu0
        %v2093 = vadd.f32 0.0, %v2092
        %2094 = vmatmul.bf16.gmra.mxu0 %v754
        %v2095 = vpop.f32.mrf.mxu0
        %v2096 = vadd.f32 0.0, %v2095
        %v2097 = vpop.f32.mrf.mxu0
        %v2098 = vadd.f32 0.0, %v2097
        %2099 = vmatmul.bf16.gmra.mxu0 %v1586
        %v2100 = vpop.f32.mrf.mxu0
        %v2101 = vadd.f32 0.0, %v2100
        %v2102 = vpop.f32.mrf.mxu0
        %v2103 = vadd.f32 0.0, %v2102
        %2104 = vmatmul.bf16.gmra.mxu0 %v2016
        %v2105 = vpop.f32.mrf.mxu0
        %v2106 = vadd.f32 0.0, %v2105
        %v2107 = vpop.f32.mrf.mxu0
        %v2108 = vadd.f32 0.0, %v2107
        %2109 = vdwg.mxu0
        %v2110 = vadd.f32 %v1954, %v2031
        %v2111 = vadd.f32 %v1955, %v2033
        %v2112 = vadd.f32 %v1956, %v2036
        %v2113 = vadd.f32 %v1957, %v2038
        %v2114 = vadd.f32 %v1958, %v2041
        %v2115 = vadd.f32 %v1959, %v2043
        %v2116 = vadd.f32 %v1960, %v2046
        %v2117 = vadd.f32 %v1961, %v2048
        %v2118 = vadd.f32 %v1962, %v2051
        %v2119 = vadd.f32 %v1963, %v2053
        %v2120 = vadd.f32 %v1964, %v2056
        %v2121 = vadd.f32 %v1965, %v2058
        %v2122 = vadd.f32 %v1966, %v2061
        %v2123 = vadd.f32 %v1967, %v2063
        %v2124 = vadd.f32 %v1968, %v2066
        %v2125 = vadd.f32 %v1969, %v2068
        %v2126 = vadd.f32 %v1970, %v2071
        %v2127 = vadd.f32 %v1971, %v2073
        %v2128 = vadd.f32 %v1972, %v2076
        %v2129 = vadd.f32 %v1973, %v2078
        %v2130 = vadd.f32 %v1974, %v2081
        %v2131 = vadd.f32 %v1975, %v2083
        %v2132 = vadd.f32 %v1976, %v2086
        %v2133 = vadd.f32 %v1977, %v2088
        %v2134 = vadd.f32 %v1978, %v2091
        %v2135 = vadd.f32 %v1979, %v2093
        %v2136 = vadd.f32 %v1980, %v2096
        %v2137 = vadd.f32 %v1981, %v2098
        %v2138 = vadd.f32 %v1982, %v2101
        %v2139 = vadd.f32 %v1983, %v2103
        %v2140 = vadd.f32 %v1984, %v2106
        %v2141 = vadd.f32 %v1985, %v2108
        %v2143 = vrot.slane %v266, 5
        %v2144 = vrot.slane %v2143, 4
        %v2145 = vrot.slane %v267, 5
        %v2146 = vsel %vm1087, %v2144, %v2145
        %v2147 = vrot.slane %v2145, 4
        %v2148 = vrot.slane %v268, 5
        %v2149 = vsel %vm1087, %v2147, %v2148
        %s2150 = scalar_lea.vmem %s210, 16
        %v2151 = vld [vmem:[%s2150] sm:$0x3]
        %v2152 = vunpack.c.l.b16 %v2146
        %v2153 = vunpack.c.l.b16 %v2149
        %v2154 = vpack.c.b16 %v2153, %v2152
        %v2156 = vsel %vm707, %v2154, 0
        %v2159 = vsel %vm756, %v2151, 0
        %2161 = vmatpush.bf16.msra.mxu0 0
        %2162 = vmatpush.bf16.msra.mxu0 0
        %2163 = vmatpush.bf16.msra.mxu0 0
        %2164 = vmatpush.bf16.msra.mxu0 0
        %2165 = vmatpush.bf16.msra.mxu0 0
        %2166 = vmatpush.bf16.msra.mxu0 0
        %2167 = vmatpush.bf16.msra.mxu0 0
        %2168 = vmatpush.bf16.msra.mxu0 %v2159
        %2169 = vmatmul.bf16.gmra.mxu0 %v1257
        %v2170 = vpop.f32.mrf.mxu0
        %v2171 = vadd.f32 0.0, %v2170
        %v2172 = vpop.f32.mrf.mxu0
        %v2173 = vadd.f32 0.0, %v2172
        %2174 = vmatmul.bf16.gmra.mxu0 %v1260
        %v2175 = vpop.f32.mrf.mxu0
        %v2176 = vadd.f32 0.0, %v2175
        %v2177 = vpop.f32.mrf.mxu0
        %v2178 = vadd.f32 0.0, %v2177
        %2179 = vmatmul.bf16.gmra.mxu0 %v1263
        %v2180 = vpop.f32.mrf.mxu0
        %v2181 = vadd.f32 0.0, %v2180
        %v2182 = vpop.f32.mrf.mxu0
        %v2183 = vadd.f32 0.0, %v2182
        %2184 = vmatmul.bf16.gmra.mxu0 %v1266
        %v2185 = vpop.f32.mrf.mxu0
        %v2186 = vadd.f32 0.0, %v2185
        %v2187 = vpop.f32.mrf.mxu0
        %v2188 = vadd.f32 0.0, %v2187
        %2189 = vmatmul.bf16.gmra.mxu0 %v1269
        %v2190 = vpop.f32.mrf.mxu0
        %v2191 = vadd.f32 0.0, %v2190
        %v2192 = vpop.f32.mrf.mxu0
        %v2193 = vadd.f32 0.0, %v2192
        %2194 = vmatmul.bf16.gmra.mxu0 %v1272
        %v2195 = vpop.f32.mrf.mxu0
        %v2196 = vadd.f32 0.0, %v2195
        %v2197 = vpop.f32.mrf.mxu0
        %v2198 = vadd.f32 0.0, %v2197
        %2199 = vmatmul.bf16.gmra.mxu0 %v1275
        %v2200 = vpop.f32.mrf.mxu0
        %v2201 = vadd.f32 0.0, %v2200
        %v2202 = vpop.f32.mrf.mxu0
        %v2203 = vadd.f32 0.0, %v2202
        %2204 = vmatmul.bf16.gmra.mxu0 %v1278
        %v2205 = vpop.f32.mrf.mxu0
        %v2206 = vadd.f32 0.0, %v2205
        %v2207 = vpop.f32.mrf.mxu0
        %v2208 = vadd.f32 0.0, %v2207
        %2209 = vmatmul.bf16.gmra.mxu0 %v1281
        %v2210 = vpop.f32.mrf.mxu0
        %v2211 = vadd.f32 0.0, %v2210
        %v2212 = vpop.f32.mrf.mxu0
        %v2213 = vadd.f32 0.0, %v2212
        %2214 = vmatmul.bf16.gmra.mxu0 %v1284
        %v2215 = vpop.f32.mrf.mxu0
        %v2216 = vadd.f32 0.0, %v2215
        %v2217 = vpop.f32.mrf.mxu0
        %v2218 = vadd.f32 0.0, %v2217
        %2219 = vmatmul.bf16.gmra.mxu0 %v1287
        %v2220 = vpop.f32.mrf.mxu0
        %v2221 = vadd.f32 0.0, %v2220
        %v2222 = vpop.f32.mrf.mxu0
        %v2223 = vadd.f32 0.0, %v2222
        %2224 = vmatmul.bf16.gmra.mxu0 %v1290
        %v2225 = vpop.f32.mrf.mxu0
        %v2226 = vadd.f32 0.0, %v2225
        %v2227 = vpop.f32.mrf.mxu0
        %v2228 = vadd.f32 0.0, %v2227
        %2229 = vmatmul.bf16.gmra.mxu0 %v1293
        %v2230 = vpop.f32.mrf.mxu0
        %v2231 = vadd.f32 0.0, %v2230
        %v2232 = vpop.f32.mrf.mxu0
        %v2233 = vadd.f32 0.0, %v2232
        %2234 = vmatmul.bf16.gmra.mxu0 %v1296
        %v2235 = vpop.f32.mrf.mxu0
        %v2236 = vadd.f32 0.0, %v2235
        %v2237 = vpop.f32.mrf.mxu0
        %v2238 = vadd.f32 0.0, %v2237
        %2239 = vmatmul.bf16.gmra.mxu0 %v1726
        %v2240 = vpop.f32.mrf.mxu0
        %v2241 = vadd.f32 0.0, %v2240
        %v2242 = vpop.f32.mrf.mxu0
        %v2243 = vadd.f32 0.0, %v2242
        %2244 = vmatmul.bf16.gmra.mxu0 %v2156
        %v2245 = vpop.f32.mrf.mxu0
        %v2246 = vadd.f32 0.0, %v2245
        %v2247 = vpop.f32.mrf.mxu0
        %v2248 = vadd.f32 0.0, %v2247
        %2249 = vdwg.mxu0
        %v2250 = vadd.f32 %v2110, %v2171
        %v2251 = vadd.f32 %v2111, %v2173
        %v2252 = vadd.f32 %v2112, %v2176
        %v2253 = vadd.f32 %v2113, %v2178
        %v2254 = vadd.f32 %v2114, %v2181
        %v2255 = vadd.f32 %v2115, %v2183
        %v2256 = vadd.f32 %v2116, %v2186
        %v2257 = vadd.f32 %v2117, %v2188
        %v2258 = vadd.f32 %v2118, %v2191
        %v2259 = vadd.f32 %v2119, %v2193
        %v2260 = vadd.f32 %v2120, %v2196
        %v2261 = vadd.f32 %v2121, %v2198
        %v2262 = vadd.f32 %v2122, %v2201
        %v2263 = vadd.f32 %v2123, %v2203
        %v2264 = vadd.f32 %v2124, %v2206
        %v2265 = vadd.f32 %v2125, %v2208
        %v2266 = vadd.f32 %v2126, %v2211
        %v2267 = vadd.f32 %v2127, %v2213
        %v2268 = vadd.f32 %v2128, %v2216
        %v2269 = vadd.f32 %v2129, %v2218
        %v2270 = vadd.f32 %v2130, %v2221
        %v2271 = vadd.f32 %v2131, %v2223
        %v2272 = vadd.f32 %v2132, %v2226
        %v2273 = vadd.f32 %v2133, %v2228
        %v2274 = vadd.f32 %v2134, %v2231
        %v2275 = vadd.f32 %v2135, %v2233
        %v2276 = vadd.f32 %v2136, %v2236
        %v2277 = vadd.f32 %v2137, %v2238
        %v2278 = vadd.f32 %v2138, %v2241
        %v2279 = vadd.f32 %v2139, %v2243
        %v2280 = vadd.f32 %v2140, %v2246
        %v2281 = vadd.f32 %v2141, %v2248
        %v2282 = vld [vmem:[%s213] sm:$0x1]
        %v2284 = vperm.slane %v2282, 0
        %v2286 = vadd.f32 %v2250, %v2284
        %v2287 = vadd.f32 %v2251, %v2284
        %v2288 = vadd.f32 %v2252, %v2284
        %v2289 = vadd.f32 %v2253, %v2284
        %v2290 = vadd.f32 %v2254, %v2284
        %v2291 = vadd.f32 %v2255, %v2284
        %v2292 = vadd.f32 %v2256, %v2284
        %v2293 = vadd.f32 %v2257, %v2284
        %v2294 = vadd.f32 %v2258, %v2284
        %v2295 = vadd.f32 %v2259, %v2284
        %v2296 = vadd.f32 %v2260, %v2284
        %v2297 = vadd.f32 %v2261, %v2284
        %v2298 = vadd.f32 %v2262, %v2284
        %v2299 = vadd.f32 %v2263, %v2284
        %v2300 = vadd.f32 %v2264, %v2284
        %v2301 = vadd.f32 %v2265, %v2284
        %v2302 = vadd.f32 %v2266, %v2284
        %v2303 = vadd.f32 %v2267, %v2284
        %v2304 = vadd.f32 %v2268, %v2284
        %v2305 = vadd.f32 %v2269, %v2284
        %v2306 = vadd.f32 %v2270, %v2284
        %v2307 = vadd.f32 %v2271, %v2284
        %v2308 = vadd.f32 %v2272, %v2284
        %v2309 = vadd.f32 %v2273, %v2284
        %v2310 = vadd.f32 %v2274, %v2284
        %v2311 = vadd.f32 %v2275, %v2284
        %v2312 = vadd.f32 %v2276, %v2284
        %v2313 = vadd.f32 %v2277, %v2284
        %v2314 = vadd.f32 %v2278, %v2284
        %v2315 = vadd.f32 %v2279, %v2284
        %v2316 = vadd.f32 %v2280, %v2284
        %v2317 = vadd.f32 %v2281, %v2284
        %v2318 = vmax.f32 %v2286, 0.0
        %v2319 = vmax.f32 %v2287, 0.0
        %v2320 = vmax.f32 %v2288, 0.0
        %v2321 = vmax.f32 %v2289, 0.0
        %v2322 = vmax.f32 %v2290, 0.0
        %v2323 = vmax.f32 %v2291, 0.0
        %v2324 = vmax.f32 %v2292, 0.0
        %v2325 = vmax.f32 %v2293, 0.0
        %v2326 = vmax.f32 %v2294, 0.0
        %v2327 = vmax.f32 %v2295, 0.0
        %v2328 = vmax.f32 %v2296, 0.0
        %v2329 = vmax.f32 %v2297, 0.0
        %v2330 = vmax.f32 %v2298, 0.0
        %v2331 = vmax.f32 %v2299, 0.0
        %v2332 = vmax.f32 %v2300, 0.0
        %v2333 = vmax.f32 %v2301, 0.0
        %v2334 = vmax.f32 %v2302, 0.0
        %v2335 = vmax.f32 %v2303, 0.0
        %v2336 = vmax.f32 %v2304, 0.0
        %v2337 = vmax.f32 %v2305, 0.0
        %v2338 = vmax.f32 %v2306, 0.0
        %v2339 = vmax.f32 %v2307, 0.0
        %v2340 = vmax.f32 %v2308, 0.0
        %v2341 = vmax.f32 %v2309, 0.0
        %v2342 = vmax.f32 %v2310, 0.0
        %v2343 = vmax.f32 %v2311, 0.0
        %v2344 = vmax.f32 %v2312, 0.0
        %v2345 = vmax.f32 %v2313, 0.0
        %v2346 = vmax.f32 %v2314, 0.0
        %v2347 = vmax.f32 %v2315, 0.0
        %v2348 = vmax.f32 %v2316, 0.0
        %v2349 = vmax.f32 %v2317, 0.0
        %2350 = vxpose.xlu0.b32.start [1/16] %v2318, 128
        %2351 = vxpose.xlu0.b32.cont [2/16] %v2319, 128
        %2352 = vxpose.xlu0.b32.cont [3/16] %v2320, 128
        %2353 = vxpose.xlu0.b32.cont [4/16] %v2321, 128
        %2354 = vxpose.xlu0.b32.cont [5/16] %v2322, 128
        %2355 = vxpose.xlu0.b32.cont [6/16] %v2323, 128
        %2356 = vxpose.xlu0.b32.cont [7/16] %v2324, 128
        %2357 = vxpose.xlu0.b32.cont [8/16] %v2325, 128
        %2358 = vxpose.xlu0.b32.cont [9/16] %v2326, 128
        %2359 = vxpose.xlu0.b32.cont [10/16] %v2327, 128
        %2360 = vxpose.xlu0.b32.cont [11/16] %v2328, 128
        %2361 = vxpose.xlu0.b32.cont [12/16] %v2329, 128
        %2362 = vxpose.xlu0.b32.cont [13/16] %v2330, 128
        %2363 = vxpose.xlu0.b32.cont [14/16] %v2331, 128
        %2364 = vxpose.xlu0.b32.cont [15/16] %v2332, 128
        %2365 = vxpose.xlu0.b32.end [16/16] %v2333, 128
        %v2366 = vpop.trf.xlu0
        %v2367 = vpop.trf.xlu0
        %v2368 = vpop.trf.xlu0
        %v2369 = vpop.trf.xlu0
        %v2370 = vpop.trf.xlu0
        %v2371 = vpop.trf.xlu0
        %v2372 = vpop.trf.xlu0
        %v2373 = vpop.trf.xlu0
        %v2374 = vpop.trf.xlu0
        %v2375 = vpop.trf.xlu0
        %v2376 = vpop.trf.xlu0
        %v2377 = vpop.trf.xlu0
        %v2378 = vpop.trf.xlu0
        %v2379 = vpop.trf.xlu0
        %v2380 = vpop.trf.xlu0
        %v2381 = vpop.trf.xlu0
        %2382 = vxpose.xlu0.b32.start [1/16] %v2334, 128
        %2383 = vxpose.xlu0.b32.cont [2/16] %v2335, 128
        %2384 = vxpose.xlu0.b32.cont [3/16] %v2336, 128
        %2385 = vxpose.xlu0.b32.cont [4/16] %v2337, 128
        %2386 = vxpose.xlu0.b32.cont [5/16] %v2338, 128
        %2387 = vxpose.xlu0.b32.cont [6/16] %v2339, 128
        %2388 = vxpose.xlu0.b32.cont [7/16] %v2340, 128
        %2389 = vxpose.xlu0.b32.cont [8/16] %v2341, 128
        %2390 = vxpose.xlu0.b32.cont [9/16] %v2342, 128
        %2391 = vxpose.xlu0.b32.cont [10/16] %v2343, 128
        %2392 = vxpose.xlu0.b32.cont [11/16] %v2344, 128
        %2393 = vxpose.xlu0.b32.cont [12/16] %v2345, 128
        %2394 = vxpose.xlu0.b32.cont [13/16] %v2346, 128
        %2395 = vxpose.xlu0.b32.cont [14/16] %v2347, 128
        %2396 = vxpose.xlu0.b32.cont [15/16] %v2348, 128
        %2397 = vxpose.xlu0.b32.end [16/16] %v2349, 128
        %v2398 = vpop.trf.xlu0
        %v2399 = vpop.trf.xlu0
        %v2400 = vpop.trf.xlu0
        %v2401 = vpop.trf.xlu0
        %v2402 = vpop.trf.xlu0
        %v2403 = vpop.trf.xlu0
        %v2404 = vpop.trf.xlu0
        %v2405 = vpop.trf.xlu0
        %v2406 = vpop.trf.xlu0
        %v2407 = vpop.trf.xlu0
        %v2408 = vpop.trf.xlu0
        %v2409 = vpop.trf.xlu0
        %v2410 = vpop.trf.xlu0
        %v2411 = vpop.trf.xlu0
        %v2412 = vpop.trf.xlu0
        %v2413 = vpop.trf.xlu0
        %2414 = vst [vmem:[%s201] sm:$0xff] %v2366
        %2415 = vst [vmem:[%s201 + $0x8] sm:$0xff] %v2398
        %s2416 = sand.u32 %s117, 1
        %s2417 = scalar_lea.sflag [#allocation3], %s2416
        %s2418 = sand.u32 %s117, 1
        %s2419 = smul.addr %s2418, 16
        %s2420 = scalar_lea.vmem [#allocation2], %s2419
        // Predicated region
        $region33: #{tpu_custom_call.1} parent=31 // pred_check
          %p2421 = pneg %p127
        $region34: #{tpu_custom_call.1} parent=31 // pred_check_branch
          %2423 = sbr.rel (%p2421) target = $region36
        $region35: #{tpu_custom_call.1} parent=31 // pred_region
          %2425 = vsyncadd %s2417, 0
          %s2426 = smul.addr %s22, 2
          %s2427 = smul.addr %s21, 2
          %s2428 = sadd.s32 %s2426, %s2427
          %s2429 = smul.addr %s2428, 8
          %s2430 = scalar_lea.hbm %s3, %s2429
          %s2432 = sshll.u32 %s2420, 4
          %s2433 = int_to_ptr.vmem [resolvable:$true] %s2432
          %s2434 = sshll.u32 %s2430, 4
          %s2435 = int_to_ptr.hbm [resolvable:$true] %s2434
          %2437 = dma.vmem_to_hbm [thread:$0]  %s2433, 256, %s2435, %s2417
        $region36: #{tpu_custom_call.1} parent=31 // pred_fallthru
          _
      $region32: #{tpu_custom_call.1} parent=5 // pred_fallthru
        _
      %p2438 = scmp.le.s32.totalorder 2, %s12
      // Predicated region
      $region37: #{tpu_custom_call.1} parent=5 // pred_check
        %p2439 = pneg %p2438
      $region38: #{tpu_custom_call.1} parent=5 // pred_check_branch
        %2441 = sbr.rel (%p2439) target = $region40
      $region39: #{tpu_custom_call.1} parent=5 // pred_region
        %s2442 = ssub.s32 %s12, 2
        // Predicated region
        $region41: #{tpu_custom_call.1} parent=39 // pred_check
          %p2443 = pneg %p133
        $region42: #{tpu_custom_call.1} parent=39 // pred_check_branch
          %2445 = sbr.rel (%p2443) target = $region44
        $region43: #{tpu_custom_call.1} parent=39 // pred_region
          %s2446 = sand.u32 %s118, 1
          %s2447 = scalar_lea.sflag [#allocation3], %s2446
          %s2448 = sand.u32 %s118, 1
          %s2449 = smul.addr %s2448, 16
          %s2450 = scalar_lea.vmem [#allocation2], %s2449
          %2452 = dma.done %s2447, 256
        $region44: #{tpu_custom_call.1} parent=39 // pred_fallthru
          _
      $region40: #{tpu_custom_call.1} parent=5 // pred_fallthru
        _
    $region6: #{tpu_custom_call.1} parent=1 // loop_footer
      %s16 = sadd.s32 1, %s12
    $region7: #{tpu_custom_call.1} parent=1 // loop_footer_branch
      %11 = sbr.rel target = $region3
    $region8: #{tpu_custom_call.1} parent=1 // loop_exit
      _
    %2453 = vsyncpa [#allocation3], 1
    %s2454 = scalar_lea.sflag [#allocation3], 1
    %2455 = vsyncpa %s2454, 1

</llo_original>
